<compile_context>
chip_gen: v7x
topology: tpu7x:2x2x1
jax: 0.10.0
libtpu: 0.0.40
codegen_flags: <defaults>
</compile_context>

<pallas_src>
import functools

import jax
import jax.numpy as jnp
import numpy as np
from jax import lax
from jax.experimental import pallas as pl
from jax.experimental.pallas import tpu as pltpu

# Leading "parallel" grid axis length: each split produces independent partial
# sums/counts/maxes.  v7x runs one split per TensorCore; v5e/v6e run them
# back-to-back (two extra tiny output blocks, negligible).
_NUM_CORE_SPLITS = 2

# Target live size (bytes) of the masked-max block [l_pad, nc, h_pad] so it
# stays in vregs instead of spilling to VMEM.
_MAX_CHUNK_BYTES = 64 * 1024


def _round_up(v, m):
    return (v + m - 1) // m * m


def _level_pool_kernel(x_ref, drow_ref, dcol_ref, sum_ref, cnt_ref, max_ref, *, nc):
    """Processes one node tile and accumulates per-split partial reductions.

    x_ref    [tn, h_pad]    f32  node embeddings (padding rows are zeros)
    drow_ref [1, tn]        i32  depths, lane-dense (padding = -1)
    dcol_ref [tn, 1]        i32  depths, sublane-oriented (padding = -1)
    sum_ref  [l_pad, h_pad] f32  partial level sums   (accumulated across i)
    cnt_ref  [l_pad, 1]     f32  partial level counts (accumulated across i)
    max_ref  [l_pad, h_pad] f32  partial level maxes  (accumulated across i)
    """
    i = pl.program_id(1)
    tn, h_pad = x_ref.shape
    l_pad = sum_ref.shape[0]

    @pl.when(i == 0)
    def _init():
        sum_ref[...] = jnp.zeros(sum_ref.shape, jnp.float32)
        cnt_ref[...] = jnp.zeros(cnt_ref.shape, jnp.float32)
        max_ref[...] = jnp.full(max_ref.shape, -jnp.inf, jnp.float32)

    # ---- one-hot level membership, lane-dense [L, TN] ----------------------
    drow = drow_ref[...]                                            # [1, TN]
    levels = lax.broadcasted_iota(jnp.int32, (l_pad, tn), 0)        # [L, TN]
    onehot = (levels == drow).astype(jnp.float32)                   # [L, TN]

    # ---- level counts: lane (XLU) reduce of the same one-hot ---------------
    cnt_ref[...] += jnp.sum(onehot, axis=1, keepdims=True)          # [L, 1]

    # ---- level sums: one MXU pass, standard [M,K]@[K,N] orientation --------
    sum_ref[...] += lax.dot_general(
        onehot, x_ref[...], (((1,), (0,)), ((), ())),
        preferred_element_type=jnp.float32)                         # [L, H]

    # ---- level maxes: blocked over node chunks so the masked block ---------
    # ---- [L, nc, H] stays vreg-resident (no VMEM spill traffic)    ---------
    lvl3 = lax.broadcasted_iota(jnp.int32, (l_pad, nc, 1), 0)       # hoisted
    tile_max = jnp.full((l_pad, h_pad), -jnp.inf, jnp.float32)
    for c in range(tn // nc):                                       # static unroll
        xc = x_ref[pl.ds(c * nc, nc), :]                            # [nc, H]
        dc = dcol_ref[pl.ds(c * nc, nc), :]                         # [nc, 1]
        m3 = dc[None, :, :] == lvl3                                 # [L, nc, 1]
        masked = jnp.where(m3, xc[None, :, :], -jnp.inf)            # [L, nc, H]
        tile_max = jnp.maximum(tile_max, jnp.max(masked, axis=1))
    max_ref[...] = jnp.maximum(max_ref[...], tile_max)


@functools.partial(jax.jit, static_argnames=("h", "l_pad", "tn", "nc", "splits"))
def _level_pool_padded(x_pad, d_row, d_col, *, h, l_pad, tn, nc, splits):
    n_pad, h_pad = x_pad.shape
    t_total = n_pad // tn
    t_per = t_total // splits

    kernel = functools.partial(_level_pool_kernel, nc=nc)
    psum, pcnt, pmax = pl.pallas_call(
        kernel,
        out_shape=(
            jax.ShapeDtypeStruct((splits, l_pad, h_pad), jnp.float32),
            jax.ShapeDtypeStruct((splits, l_pad, 1), jnp.float32),
            jax.ShapeDtypeStruct((splits, l_pad, h_pad), jnp.float32),
        ),
        grid_spec=pltpu.PrefetchScalarGridSpec(
            num_scalar_prefetch=0,
            grid=(splits, t_per),
            in_specs=[
                pl.BlockSpec((tn, h_pad), lambda c, i: (c * t_per + i, 0)),
                pl.BlockSpec((1, tn), lambda c, i: (0, c * t_per + i)),
                pl.BlockSpec((tn, 1), lambda c, i: (c * t_per + i, 0)),
            ],
            out_specs=[
                pl.BlockSpec((None, l_pad, h_pad), lambda c, i: (c, 0, 0)),
                pl.BlockSpec((None, l_pad, 1), lambda c, i: (c, 0, 0)),
                pl.BlockSpec((None, l_pad, h_pad), lambda c, i: (c, 0, 0)),
            ],
        ),
        compiler_params=pltpu.CompilerParams(
            # split axis parallel (uses both TCs on v7x), node axis is the
            # reduction -> arbitrary
            dimension_semantics=("parallel", "arbitrary"),
            vmem_limit_bytes=32 * 1024 * 1024,   # safe on v7x's 64 MiB VMEM
        ),
        cost_estimate=pl.CostEstimate(
            # MXU one-hot matmul (2*N*L*H) + VPU compare/select/max (~3*N*L*H)
            flops=5 * n_pad * l_pad * h_pad,
            transcendentals=0,
            bytes_accessed=4 * (n_pad * h_pad + 2 * n_pad)
            + 4 * splits * l_pad * (2 * h_pad + 1),
        ),
    )(x_pad, d_row, d_col)

    # Combine the tiny per-split partials and finalize (plain XLA ops).
    s = psum.sum(axis=0)                                 # [L, Hp]
    cnt = pcnt.sum(axis=0)                               # [L, 1]
    m = pmax.max(axis=0)                                 # [L, Hp]
    has = cnt > 0.0
    mean = jnp.where(has, s / jnp.maximum(cnt, 1.0), 0.0)
    mx = jnp.where(has, m, 0.0)
    return jnp.concatenate([mean[:, :h], mx[:, :h]], axis=1)   # [L, 2h]


def level_wise_pooling(node_embeddings, node_depths):
    """JAX/Pallas equivalent of LevelWisePooling.forward."""
    x = jnp.asarray(node_embeddings, dtype=jnp.float32)
    d = jnp.asarray(node_depths)
    if d.ndim > 1:
        d = d[0]                                   # == squeeze(0) in the torch code
    d = d.astype(jnp.int32)
    n, h = x.shape

    # Data-dependent level count (mirrors `.item()` in the torch module) -> host sync.
    max_depth = int(jax.device_get(jnp.max(d))) + 1

    # Bucketed/padded static sizes: full (8,128) tiles + fewer recompiles.
    l_pad = _round_up(max_depth, 8)
    h_pad = _round_up(h, 128)
    splits = _NUM_CORE_SPLITS
    # Node tile: large and lane-aligned, independent of L*H (no intermediate cap).
    tn = min(512, _round_up(n, 128))
    n_pad = _round_up(n, tn * splits)

    # In-kernel node-chunk size for the masked-max block [l_pad, nc, h_pad].
    # TODO(synk): for very large l_pad*h_pad also chunk the H axis in-kernel.
    nc = max(8, min(tn, (_MAX_CHUNK_BYTES // (l_pad * h_pad * 4)) // 8 * 8))
    while tn % nc:
        nc -= 8

    x_pad = jnp.pad(x, ((0, n_pad - n), (0, h_pad - h)))
    d_pad = jnp.pad(d, (0, n_pad - n), constant_values=-1)   # never matches a level

    out = _level_pool_padded(
        x_pad, d_pad.reshape(1, n_pad), d_pad.reshape(n_pad, 1),
        h=h, l_pad=l_pad, tn=tn, nc=nc, splits=splits)
    # Row slice outside the jitted call so recompiles depend only on the
    # bucketed l_pad, not on every distinct max_depth.
    return out[:max_depth]


def _reference(node_embeddings, node_depths):
    """Pure host-side (numpy) reference mirroring the PyTorch forward."""
    x = np.asarray(jax.device_get(node_embeddings), dtype=np.float32)
    d = np.asarray(jax.device_get(node_depths))
    if d.ndim > 1:
        d = d[0]
    max_depth = int(d.max()) + 1
    rows = []
    for level in range(max_depth):
        mask = d == level
        if mask.sum() > 0:
            sel = x[mask]
            rows.append(np.concatenate([sel.mean(axis=0), sel.max(axis=0)]))
        else:
            rows.append(np.zeros(2 * x.shape[1], dtype=np.float32))
    return jnp.asarray(np.stack(rows))


if __name__ == "__main__":
    key = jax.random.PRNGKey(0)
    k_emb, k_depth = jax.random.split(key)

    num_nodes = 16
    hidden_dim = 32
    node_embeddings = jax.random.normal(
        k_emb, (num_nodes, hidden_dim), dtype=jnp.float32)
    node_depths = jax.random.randint(
        k_depth, (num_nodes,), 0, 5, dtype=jnp.int32)

    out = jax.block_until_ready(level_wise_pooling(node_embeddings, node_depths))
    ref = _reference(node_embeddings, node_depths)
    assert out.shape == ref.shape, (out.shape, ref.shape)

    h = hidden_dim
    # Max half is exact (pure selects/maxes).
    assert jnp.allclose(out[:, h:], ref[:, h:], atol=1e-5, rtol=1e-5), "max-pool mismatch"
    # Mean half tolerates the MXU's f32 matmul pass decomposition.
    assert jnp.allclose(out[:, :h], ref[:, :h], atol=2e-3, rtol=2e-3), "mean-pool mismatch"

    print("KERNEL_OK")
</pallas_src>

<mosaic_0001>
module attributes {stable_mosaic.version = 11 : i64} {
  func.func @_level_pool_kernel(%arg0: i32, %arg1: i32, %arg2: memref<128x128xf32, #tpu.memory_space<vmem>>, %arg3: memref<1x128xi32, #tpu.memory_space<vmem>>, %arg4: memref<128x1xi32, #tpu.memory_space<vmem>>, %arg5: memref<1x8x128xf32, #tpu.memory_space<vmem>>, %arg6: memref<1x8x1xf32, #tpu.memory_space<vmem>>, %arg7: memref<1x8x128xf32, #tpu.memory_space<vmem>>) attributes {dimension_semantics = [#tpu.dimension_semantics<parallel>, #tpu.dimension_semantics<arbitrary>], iteration_bounds = array<i64: 2, 1>, scalar_prefetch = 0 : i64, scratch_operands = 0 : i64, tpu.core_type = #tpu.core_type<tc>, window_params = [{transform_indices = @transform_0, window_bounds = array<i64: 128, 128>}, {transform_indices = @transform_1, window_bounds = array<i64: 1, 128>}, {transform_indices = @transform_2, window_bounds = array<i64: 128, 1>}, {transform_indices = @transform_3, window_bounds = array<i64: 1, 8, 128>}, {transform_indices = @transform_4, window_bounds = array<i64: 1, 8, 1>}, {transform_indices = @transform_5, window_bounds = array<i64: 1, 8, 128>}]} {
    %c0_i32 = arith.constant 0 : i32
    %0 = arith.cmpi eq, %arg1, %c0_i32 : i32
    %1 = arith.extui %0 : i1 to i32
    %c0_i32_0 = arith.constant 0 : i32
    %2 = arith.cmpi ne, %1, %c0_i32_0 : i32
    scf.if %2 {
      %cst_65 = arith.constant 0.000000e+00 : f32
      %145 = vector.broadcast %cst_65 : f32 to vector<8x128xf32>
      %c0_66 = arith.constant 0 : index
      %c0_67 = arith.constant 0 : index
      %c0_68 = arith.constant 0 : index
      %146 = vector.load %arg5[%c0_66, %c0_67, %c0_68] : memref<1x8x128xf32, #tpu.memory_space<vmem>>, vector<1x8x128xf32>
      %147 = vector.shape_cast %146 : vector<1x8x128xf32> to vector<8x128xf32>
      %148 = vector.shape_cast %145 : vector<8x128xf32> to vector<1x8x128xf32>
      tpu.vector_store %arg5[%c0_66, %c0_67, %c0_68], %148 {strides = array<i32>} : memref<1x8x128xf32, #tpu.memory_space<vmem>>, vector<1x8x128xf32>,
      %cst_69 = arith.constant 0.000000e+00 : f32
      %149 = vector.broadcast %cst_69 : f32 to vector<8x1xf32>
      %c0_70 = arith.constant 0 : index
      %c0_71 = arith.constant 0 : index
      %c0_72 = arith.constant 0 : index
      %150 = vector.load %arg6[%c0_70, %c0_71, %c0_72] : memref<1x8x1xf32, #tpu.memory_space<vmem>>, vector<1x8x1xf32>
      %151 = vector.shape_cast %150 : vector<1x8x1xf32> to vector<8x1xf32>
      %152 = vector.shape_cast %149 : vector<8x1xf32> to vector<1x8x1xf32>
      tpu.vector_store %arg6[%c0_70, %c0_71, %c0_72], %152 {strides = array<i32>} : memref<1x8x1xf32, #tpu.memory_space<vmem>>, vector<1x8x1xf32>,
      %cst_73 = arith.constant 0xFF800000 : f32
      %153 = vector.broadcast %cst_73 : f32 to vector<8x128xf32>
      %c0_74 = arith.constant 0 : index
      %c0_75 = arith.constant 0 : index
      %c0_76 = arith.constant 0 : index
      %154 = vector.load %arg7[%c0_74, %c0_75, %c0_76] : memref<1x8x128xf32, #tpu.memory_space<vmem>>, vector<1x8x128xf32>
      %155 = vector.shape_cast %154 : vector<1x8x128xf32> to vector<8x128xf32>
      %156 = vector.shape_cast %153 : vector<8x128xf32> to vector<1x8x128xf32>
      tpu.vector_store %arg7[%c0_74, %c0_75, %c0_76], %156 {strides = array<i32>} : memref<1x8x128xf32, #tpu.memory_space<vmem>>, vector<1x8x128xf32>,
    } else {
    }
    %c0 = arith.constant 0 : index
    %c0_1 = arith.constant 0 : index
    %3 = vector.load %arg3[%c0, %c0_1] : memref<1x128xi32, #tpu.memory_space<vmem>>, vector<1x128xi32>
    %4 = tpu.iota {dimensions = array<i32: 0>} : vector<8x128xi32>
    %5 = vector.broadcast %3 : vector<1x128xi32> to vector<8x128xi32>
    %6 = arith.cmpi eq, %4, %5 : vector<8x128xi32>
    %7 = arith.extui %6 : vector<8x128xi1> to vector<8x128xi32>
    %8 = arith.sitofp %7 : vector<8x128xi32> to vector<8x128xf32>
    %c0_2 = arith.constant 0 : index
    %c0_3 = arith.constant 0 : index
    %c0_4 = arith.constant 0 : index
    %9 = vector.load %arg6[%c0_2, %c0_3, %c0_4] : memref<1x8x1xf32, #tpu.memory_space<vmem>>, vector<1x8x1xf32>
    %10 = vector.shape_cast %9 : vector<1x8x1xf32> to vector<8x1xf32>
    %cst = arith.constant dense<0.000000e+00> : vector<8xf32>
    %11 = vector.multi_reduction <add>, %8, %cst [1] : vector<8x128xf32> to vector<8xf32>
    %12 = vector.shape_cast %11 : vector<8xf32> to vector<8x1xf32>
    %13 = arith.addf %10, %12 : vector<8x1xf32>
    %c0_5 = arith.constant 0 : index
    %c0_6 = arith.constant 0 : index
    %c0_7 = arith.constant 0 : index
    %14 = vector.load %arg6[%c0_5, %c0_6, %c0_7] : memref<1x8x1xf32, #tpu.memory_space<vmem>>, vector<1x8x1xf32>
    %15 = vector.shape_cast %14 : vector<1x8x1xf32> to vector<8x1xf32>
    %16 = vector.shape_cast %13 : vector<8x1xf32> to vector<1x8x1xf32>
    tpu.vector_store %arg6[%c0_5, %c0_6, %c0_7], %16 {strides = array<i32>} : memref<1x8x1xf32, #tpu.memory_space<vmem>>, vector<1x8x1xf32>,
    %c0_8 = arith.constant 0 : index
    %c0_9 = arith.constant 0 : index
    %c0_10 = arith.constant 0 : index
    %17 = vector.load %arg5[%c0_8, %c0_9, %c0_10] : memref<1x8x128xf32, #tpu.memory_space<vmem>>, vector<1x8x128xf32>
    %18 = vector.shape_cast %17 : vector<1x8x128xf32> to vector<8x128xf32>
    %c0_11 = arith.constant 0 : index
    %c0_12 = arith.constant 0 : index
    %19 = vector.load %arg2[%c0_11, %c0_12] : memref<128x128xf32, #tpu.memory_space<vmem>>, vector<128x128xf32>
    %cst_13 = arith.constant dense<0.000000e+00> : vector<8x128xf32>
    %20 = tpu.matmul %8, %19, %cst_13 {dimension_numbers = #tpu.dot_dimension_numbers<[1], [0], [0], [1], [0, 0, 1, 1], [], []>} : vector<8x128xf32>, vector<128x128xf32>, vector<8x128xf32> -> vector<8x128xf32>
    %21 = arith.addf %18, %20 : vector<8x128xf32>
    %c0_14 = arith.constant 0 : index
    %c0_15 = arith.constant 0 : index
    %c0_16 = arith.constant 0 : index
    %22 = vector.load %arg5[%c0_14, %c0_15, %c0_16] : memref<1x8x128xf32, #tpu.memory_space<vmem>>, vector<1x8x128xf32>
    %23 = vector.shape_cast %22 : vector<1x8x128xf32> to vector<8x128xf32>
    %24 = vector.shape_cast %21 : vector<8x128xf32> to vector<1x8x128xf32>
    tpu.vector_store %arg5[%c0_14, %c0_15, %c0_16], %24 {strides = array<i32>} : memref<1x8x128xf32, #tpu.memory_space<vmem>>, vector<1x8x128xf32>,
    %25 = tpu.iota {dimensions = array<i32: 0>} : vector<8x16x1xi32>
    %cst_17 = arith.constant 0xFF800000 : f32
    %26 = vector.broadcast %cst_17 : f32 to vector<8x128xf32>
    %c0_18 = arith.constant 0 : index
    %c0_19 = arith.constant 0 : index
    %27 = vector.load %arg2[%c0_18, %c0_19] : memref<128x128xf32, #tpu.memory_space<vmem>>, vector<16x128xf32>
    %c0_20 = arith.constant 0 : index
    %c0_21 = arith.constant 0 : index
    %28 = vector.load %arg4[%c0_20, %c0_21] : memref<128x1xi32, #tpu.memory_space<vmem>>, vector<16x1xi32>
    %29 = vector.shape_cast %28 : vector<16x1xi32> to vector<1x16x1xi32>
    %30 = vector.broadcast %29 : vector<1x16x1xi32> to vector<8x16x1xi32>
    %31 = arith.cmpi eq, %30, %25 : vector<8x16x1xi32>
    %32 = vector.shape_cast %27 : vector<16x128xf32> to vector<1x16x128xf32>
    %cst_22 = arith.constant 0xFF800000 : f32
    %33 = vector.shape_cast %31 : vector<8x16x1xi1> to vector<8x16x1xi1>
    %34 = vector.broadcast %33 : vector<8x16x1xi1> to vector<8x16x128xi1>
    %35 = vector.shape_cast %32 : vector<1x16x128xf32> to vector<1x16x128xf32>
    %36 = vector.broadcast %35 : vector<1x16x128xf32> to vector<8x16x128xf32>
    %37 = vector.broadcast %cst_22 : f32 to vector<8x16x128xf32>
    %38 = arith.select %34, %36, %37 : vector<8x16x128xi1>, vector<8x16x128xf32>
    %cst_23 = arith.constant dense<0xFF800000> : vector<8x128xf32>
    %39 = vector.multi_reduction <maximumf>, %38, %cst_23 [1] : vector<8x16x128xf32> to vector<8x128xf32>
    %40 = arith.maximumf %26, %39 : vector<8x128xf32>
    %c16 = arith.constant 16 : index
    %c0_24 = arith.constant 0 : index
    %41 = vector.load %arg2[%c16, %c0_24] : memref<128x128xf32, #tpu.memory_space<vmem>>, vector<16x128xf32>
    %c16_25 = arith.constant 16 : index
    %c0_26 = arith.constant 0 : index
    %42 = vector.load %arg4[%c16_25, %c0_26] : memref<128x1xi32, #tpu.memory_space<vmem>>, vector<16x1xi32>
    %43 = vector.shape_cast %42 : vector<16x1xi32> to vector<1x16x1xi32>
    %44 = vector.broadcast %43 : vector<1x16x1xi32> to vector<8x16x1xi32>
    %45 = arith.cmpi eq, %44, %25 : vector<8x16x1xi32>
    %46 = vector.shape_cast %41 : vector<16x128xf32> to vector<1x16x128xf32>
    %cst_27 = arith.constant 0xFF800000 : f32
    %47 = vector.shape_cast %45 : vector<8x16x1xi1> to vector<8x16x1xi1>
    %48 = vector.broadcast %47 : vector<8x16x1xi1> to vector<8x16x128xi1>
    %49 = vector.shape_cast %46 : vector<1x16x128xf32> to vector<1x16x128xf32>
    %50 = vector.broadcast %49 : vector<1x16x128xf32> to vector<8x16x128xf32>
    %51 = vector.broadcast %cst_27 : f32 to vector<8x16x128xf32>
    %52 = arith.select %48, %50, %51 : vector<8x16x128xi1>, vector<8x16x128xf32>
    %cst_28 = arith.constant dense<0xFF800000> : vector<8x128xf32>
    %53 = vector.multi_reduction <maximumf>, %52, %cst_28 [1] : vector<8x16x128xf32> to vector<8x128xf32>
    %54 = arith.maximumf %40, %53 : vector<8x128xf32>
    %c32 = arith.constant 32 : index
    %c0_29 = arith.constant 0 : index
    %55 = vector.load %arg2[%c32, %c0_29] : memref<128x128xf32, #tpu.memory_space<vmem>>, vector<16x128xf32>
    %c32_30 = arith.constant 32 : index
    %c0_31 = arith.constant 0 : index
    %56 = vector.load %arg4[%c32_30, %c0_31] : memref<128x1xi32, #tpu.memory_space<vmem>>, vector<16x1xi32>
    %57 = vector.shape_cast %56 : vector<16x1xi32> to vector<1x16x1xi32>
    %58 = vector.broadcast %57 : vector<1x16x1xi32> to vector<8x16x1xi32>
    %59 = arith.cmpi eq, %58, %25 : vector<8x16x1xi32>
    %60 = vector.shape_cast %55 : vector<16x128xf32> to vector<1x16x128xf32>
    %cst_32 = arith.constant 0xFF800000 : f32
    %61 = vector.shape_cast %59 : vector<8x16x1xi1> to vector<8x16x1xi1>
    %62 = vector.broadcast %61 : vector<8x16x1xi1> to vector<8x16x128xi1>
    %63 = vector.shape_cast %60 : vector<1x16x128xf32> to vector<1x16x128xf32>
    %64 = vector.broadcast %63 : vector<1x16x128xf32> to vector<8x16x128xf32>
    %65 = vector.broadcast %cst_32 : f32 to vector<8x16x128xf32>
    %66 = arith.select %62, %64, %65 : vector<8x16x128xi1>, vector<8x16x128xf32>
    %cst_33 = arith.constant dense<0xFF800000> : vector<8x128xf32>
    %67 = vector.multi_reduction <maximumf>, %66, %cst_33 [1] : vector<8x16x128xf32> to vector<8x128xf32>
    %68 = arith.maximumf %54, %67 : vector<8x128xf32>
    %c48 = arith.constant 48 : index
    %c0_34 = arith.constant 0 : index
    %69 = vector.load %arg2[%c48, %c0_34] : memref<128x128xf32, #tpu.memory_space<vmem>>, vector<16x128xf32>
    %c48_35 = arith.constant 48 : index
    %c0_36 = arith.constant 0 : index
    %70 = vector.load %arg4[%c48_35, %c0_36] : memref<128x1xi32, #tpu.memory_space<vmem>>, vector<16x1xi32>
    %71 = vector.shape_cast %70 : vector<16x1xi32> to vector<1x16x1xi32>
    %72 = vector.broadcast %71 : vector<1x16x1xi32> to vector<8x16x1xi32>
    %73 = arith.cmpi eq, %72, %25 : vector<8x16x1xi32>
    %74 = vector.shape_cast %69 : vector<16x128xf32> to vector<1x16x128xf32>
    %cst_37 = arith.constant 0xFF800000 : f32
    %75 = vector.shape_cast %73 : vector<8x16x1xi1> to vector<8x16x1xi1>
    %76 = vector.broadcast %75 : vector<8x16x1xi1> to vector<8x16x128xi1>
    %77 = vector.shape_cast %74 : vector<1x16x128xf32> to vector<1x16x128xf32>
    %78 = vector.broadcast %77 : vector<1x16x128xf32> to vector<8x16x128xf32>
    %79 = vector.broadcast %cst_37 : f32 to vector<8x16x128xf32>
    %80 = arith.select %76, %78, %79 : vector<8x16x128xi1>, vector<8x16x128xf32>
    %cst_38 = arith.constant dense<0xFF800000> : vector<8x128xf32>
    %81 = vector.multi_reduction <maximumf>, %80, %cst_38 [1] : vector<8x16x128xf32> to vector<8x128xf32>
    %82 = arith.maximumf %68, %81 : vector<8x128xf32>
    %c64 = arith.constant 64 : index
    %c0_39 = arith.constant 0 : index
    %83 = vector.load %arg2[%c64, %c0_39] : memref<128x128xf32, #tpu.memory_space<vmem>>, vector<16x128xf32>
    %c64_40 = arith.constant 64 : index
    %c0_41 = arith.constant 0 : index
    %84 = vector.load %arg4[%c64_40, %c0_41] : memref<128x1xi32, #tpu.memory_space<vmem>>, vector<16x1xi32>
    %85 = vector.shape_cast %84 : vector<16x1xi32> to vector<1x16x1xi32>
    %86 = vector.broadcast %85 : vector<1x16x1xi32> to vector<8x16x1xi32>
    %87 = arith.cmpi eq, %86, %25 : vector<8x16x1xi32>
    %88 = vector.shape_cast %83 : vector<16x128xf32> to vector<1x16x128xf32>
    %cst_42 = arith.constant 0xFF800000 : f32
    %89 = vector.shape_cast %87 : vector<8x16x1xi1> to vector<8x16x1xi1>
    %90 = vector.broadcast %89 : vector<8x16x1xi1> to vector<8x16x128xi1>
    %91 = vector.shape_cast %88 : vector<1x16x128xf32> to vector<1x16x128xf32>
    %92 = vector.broadcast %91 : vector<1x16x128xf32> to vector<8x16x128xf32>
    %93 = vector.broadcast %cst_42 : f32 to vector<8x16x128xf32>
    %94 = arith.select %90, %92, %93 : vector<8x16x128xi1>, vector<8x16x128xf32>
    %cst_43 = arith.constant dense<0xFF800000> : vector<8x128xf32>
    %95 = vector.multi_reduction <maximumf>, %94, %cst_43 [1] : vector<8x16x128xf32> to vector<8x128xf32>
    %96 = arith.maximumf %82, %95 : vector<8x128xf32>
    %c80 = arith.constant 80 : index
    %c0_44 = arith.constant 0 : index
    %97 = vector.load %arg2[%c80, %c0_44] : memref<128x128xf32, #tpu.memory_space<vmem>>, vector<16x128xf32>
    %c80_45 = arith.constant 80 : index
    %c0_46 = arith.constant 0 : index
    %98 = vector.load %arg4[%c80_45, %c0_46] : memref<128x1xi32, #tpu.memory_space<vmem>>, vector<16x1xi32>
    %99 = vector.shape_cast %98 : vector<16x1xi32> to vector<1x16x1xi32>
    %100 = vector.broadcast %99 : vector<1x16x1xi32> to vector<8x16x1xi32>
    %101 = arith.cmpi eq, %100, %25 : vector<8x16x1xi32>
    %102 = vector.shape_cast %97 : vector<16x128xf32> to vector<1x16x128xf32>
    %cst_47 = arith.constant 0xFF800000 : f32
    %103 = vector.shape_cast %101 : vector<8x16x1xi1> to vector<8x16x1xi1>
    %104 = vector.broadcast %103 : vector<8x16x1xi1> to vector<8x16x128xi1>
    %105 = vector.shape_cast %102 : vector<1x16x128xf32> to vector<1x16x128xf32>
    %106 = vector.broadcast %105 : vector<1x16x128xf32> to vector<8x16x128xf32>
    %107 = vector.broadcast %cst_47 : f32 to vector<8x16x128xf32>
    %108 = arith.select %104, %106, %107 : vector<8x16x128xi1>, vector<8x16x128xf32>
    %cst_48 = arith.constant dense<0xFF800000> : vector<8x128xf32>
    %109 = vector.multi_reduction <maximumf>, %108, %cst_48 [1] : vector<8x16x128xf32> to vector<8x128xf32>
    %110 = arith.maximumf %96, %109 : vector<8x128xf32>
    %c96 = arith.constant 96 : index
    %c0_49 = arith.constant 0 : index
    %111 = vector.load %arg2[%c96, %c0_49] : memref<128x128xf32, #tpu.memory_space<vmem>>, vector<16x128xf32>
    %c96_50 = arith.constant 96 : index
    %c0_51 = arith.constant 0 : index
    %112 = vector.load %arg4[%c96_50, %c0_51] : memref<128x1xi32, #tpu.memory_space<vmem>>, vector<16x1xi32>
    %113 = vector.shape_cast %112 : vector<16x1xi32> to vector<1x16x1xi32>
    %114 = vector.broadcast %113 : vector<1x16x1xi32> to vector<8x16x1xi32>
    %115 = arith.cmpi eq, %114, %25 : vector<8x16x1xi32>
    %116 = vector.shape_cast %111 : vector<16x128xf32> to vector<1x16x128xf32>
    %cst_52 = arith.constant 0xFF800000 : f32
    %117 = vector.shape_cast %115 : vector<8x16x1xi1> to vector<8x16x1xi1>
    %118 = vector.broadcast %117 : vector<8x16x1xi1> to vector<8x16x128xi1>
    %119 = vector.shape_cast %116 : vector<1x16x128xf32> to vector<1x16x128xf32>
    %120 = vector.broadcast %119 : vector<1x16x128xf32> to vector<8x16x128xf32>
    %121 = vector.broadcast %cst_52 : f32 to vector<8x16x128xf32>
    %122 = arith.select %118, %120, %121 : vector<8x16x128xi1>, vector<8x16x128xf32>
    %cst_53 = arith.constant dense<0xFF800000> : vector<8x128xf32>
    %123 = vector.multi_reduction <maximumf>, %122, %cst_53 [1] : vector<8x16x128xf32> to vector<8x128xf32>
    %124 = arith.maximumf %110, %123 : vector<8x128xf32>
    %c112 = arith.constant 112 : index
    %c0_54 = arith.constant 0 : index
    %125 = vector.load %arg2[%c112, %c0_54] : memref<128x128xf32, #tpu.memory_space<vmem>>, vector<16x128xf32>
    %c112_55 = arith.constant 112 : index
    %c0_56 = arith.constant 0 : index
    %126 = vector.load %arg4[%c112_55, %c0_56] : memref<128x1xi32, #tpu.memory_space<vmem>>, vector<16x1xi32>
    %127 = vector.shape_cast %126 : vector<16x1xi32> to vector<1x16x1xi32>
    %128 = vector.broadcast %127 : vector<1x16x1xi32> to vector<8x16x1xi32>
    %129 = arith.cmpi eq, %128, %25 : vector<8x16x1xi32>
    %130 = vector.shape_cast %125 : vector<16x128xf32> to vector<1x16x128xf32>
    %cst_57 = arith.constant 0xFF800000 : f32
    %131 = vector.shape_cast %129 : vector<8x16x1xi1> to vector<8x16x1xi1>
    %132 = vector.broadcast %131 : vector<8x16x1xi1> to vector<8x16x128xi1>
    %133 = vector.shape_cast %130 : vector<1x16x128xf32> to vector<1x16x128xf32>
    %134 = vector.broadcast %133 : vector<1x16x128xf32> to vector<8x16x128xf32>
    %135 = vector.broadcast %cst_57 : f32 to vector<8x16x128xf32>
    %136 = arith.select %132, %134, %135 : vector<8x16x128xi1>, vector<8x16x128xf32>
    %cst_58 = arith.constant dense<0xFF800000> : vector<8x128xf32>
    %137 = vector.multi_reduction <maximumf>, %136, %cst_58 [1] : vector<8x16x128xf32> to vector<8x128xf32>
    %138 = arith.maximumf %124, %137 : vector<8x128xf32>
    %c0_59 = arith.constant 0 : index
    %c0_60 = arith.constant 0 : index
    %c0_61 = arith.constant 0 : index
    %139 = vector.load %arg7[%c0_59, %c0_60, %c0_61] : memref<1x8x128xf32, #tpu.memory_space<vmem>>, vector<1x8x128xf32>
    %140 = vector.shape_cast %139 : vector<1x8x128xf32> to vector<8x128xf32>
    %141 = arith.maximumf %140, %138 : vector<8x128xf32>
    %c0_62 = arith.constant 0 : index
    %c0_63 = arith.constant 0 : index
    %c0_64 = arith.constant 0 : index
    %142 = vector.load %arg7[%c0_62, %c0_63, %c0_64] : memref<1x8x128xf32, #tpu.memory_space<vmem>>, vector<1x8x128xf32>
    %143 = vector.shape_cast %142 : vector<1x8x128xf32> to vector<8x128xf32>
    %144 = vector.shape_cast %141 : vector<8x128xf32> to vector<1x8x128xf32>
    tpu.vector_store %arg7[%c0_62, %c0_63, %c0_64], %144 {strides = array<i32>} : memref<1x8x128xf32, #tpu.memory_space<vmem>>, vector<1x8x128xf32>,
    return
  }
  func.func @transform_0(%arg0: i32, %arg1: i32) -> (i32, i32) {
    %c1_i32 = arith.constant 1 : i32
    %0 = arith.muli %arg0, %c1_i32 : i32
    %1 = arith.addi %0, %arg1 : i32
    %c0_i32 = arith.constant 0 : i32
    %c0_i32_0 = arith.constant 0 : i32
    return %1, %c0_i32 : i32, i32
  }
  func.func @transform_1(%arg0: i32, %arg1: i32) -> (i32, i32) {
    %c1_i32 = arith.constant 1 : i32
    %0 = arith.muli %arg0, %c1_i32 : i32
    %1 = arith.addi %0, %arg1 : i32
    %c0_i32 = arith.constant 0 : i32
    %c0_i32_0 = arith.constant 0 : i32
    return %c0_i32, %1 : i32, i32
  }
  func.func @transform_2(%arg0: i32, %arg1: i32) -> (i32, i32) {
    %c1_i32 = arith.constant 1 : i32
    %0 = arith.muli %arg0, %c1_i32 : i32
    %1 = arith.addi %0, %arg1 : i32
    %c0_i32 = arith.constant 0 : i32
    %c0_i32_0 = arith.constant 0 : i32
    return %1, %c0_i32 : i32, i32
  }
  func.func @transform_3(%arg0: i32, %arg1: i32) -> (i32, i32, i32) {
    %c0_i32 = arith.constant 0 : i32
    %c0_i32_0 = arith.constant 0 : i32
    %c0_i32_1 = arith.constant 0 : i32
    return %arg0, %c0_i32, %c0_i32_0 : i32, i32, i32
  }
  func.func @transform_4(%arg0: i32, %arg1: i32) -> (i32, i32, i32) {
    %c0_i32 = arith.constant 0 : i32
    %c0_i32_0 = arith.constant 0 : i32
    %c0_i32_1 = arith.constant 0 : i32
    return %arg0, %c0_i32, %c0_i32_0 : i32, i32, i32
  }
  func.func @transform_5(%arg0: i32, %arg1: i32) -> (i32, i32, i32) {
    %c0_i32 = arith.constant 0 : i32
    %c0_i32_0 = arith.constant 0 : i32
    %c0_i32_1 = arith.constant 0 : i32
    return %arg0, %c0_i32, %c0_i32_0 : i32, i32, i32
  }
}

</mosaic_0001>

<llo_original>
// kernel: _level_pool_padded.1
$region0: #{_level_pool_padded.1}
  #allocation0 [shape = 'u32[]', space=smem, size = 0x4, offset = 0x4, fixed_abs, tag = 'smem constant byte address 0x4 - core index']
  #allocation1 [shape = 'u32[144,128]{1,0:T(1,128)}', space=vmem, size = 0x12000, scoped, tag = 'internal scratch']
  %s0 = inlined_call_operand.vmem [shape: f32[256,128], index: 0, kind: input, shape index: {}]
  %s1 = inlined_call_operand.vmem [shape: s32[1,256], index: 1, kind: input, shape index: {}]
  %s2 = inlined_call_operand.vmem [shape: s32[256,1], index: 2, kind: input, shape index: {}]
  %s3 = inlined_call_operand.vmem [shape: f32[2,8,128], index: 3, kind: output, shape index: {0}]
  %s4 = inlined_call_operand.vmem [shape: f32[2,8,1], index: 4, kind: output, shape index: {1}]
  %s5 = inlined_call_operand.vmem [shape: f32[2,8,128], index: 5, kind: output, shape index: {2}]
  %6 = xla_tuple %s3, %s4, %s5
  %s7 = sld [smem:[#allocation0]]
  $region65: #{_level_pool_padded.1} parent=0
    _
  %s9 = ssub.s32 1, %s7
  %s10 = scalar_select 0, %s9, %s7
  loop: start=0, step=1, limit=4
  $region2: #{_level_pool_padded.1} parent=0 // loop_pre_header
    _
  $region3: #{_level_pool_padded.1} parent=0 // loop_header
    %s12 = sphi 0, %s16
    %p13 = scmp.ge.s32.totalorder %s12, 4
    %s19 = sphi 0, %s31
    %s20 = sphi 0, %s27
    %s21 = sphi 0, %s19
    %s22 = sphi 0, %s20
    %s23 = sphi 0, %s21
    %s24 = sphi 0, %s22
    %s36 = sphi 0, %s38
    %s39 = sphi 0, %s36
    %s40 = sphi 0, %s39
    %s56 = sphi 0, %s40
    %s64 = sphi 0, %s66
    %s67 = sphi 0, %s64
    %s68 = sphi 0, %s67
    %s84 = sphi 0, %s68
    %s92 = sphi 0, %s94
    %s95 = sphi 0, %s92
    %s96 = sphi 0, %s95
    %s112 = sphi 0, %s96
    %s118 = sphi 0, %s120
    %s121 = sphi 0, %s118
    %s122 = sphi 0, %s121
    %s138 = sphi 0, %s122
    %s144 = sphi 0, %s146
    %s147 = sphi 0, %s144
    %s148 = sphi 0, %s147
    %s164 = sphi 0, %s148
    %s170 = sphi 0, %s172
    %s173 = sphi 0, %s170
    %s174 = sphi 0, %s173
    %s190 = sphi 0, %s174
  $region4: #{_level_pool_padded.1} parent=0 // loop_header_branch
    %15 = sbr.rel (%p13) target = $region8
  $region5: #{_level_pool_padded.1} parent=0 // loop_body
    %s17 = ssub.s32 %s12, 1
    %s18 = ssub.s32 %s12, 2
    %s25 = sadd.s32 1, %s20
    %p26 = scmp.ge.s32.totalorder %s25, 1
    %s27 = scalar_select %p26, 0, %s25
    %s28 = sadd.s32 1, %s19
    %s29 = scalar_select %p26, %s28, %s19
    %p30 = scmp.ge.s32.totalorder %s29, 2
    %s31 = scalar_select %p30, 0, %s29
    %s32 = sadd.s32 %s19, %s20
    %s33 = sadd.s32 %s31, %s27
    %s34 = ssub.s32 %s32, %s33
    %p35 = scmp.eq.s32.totalorder %s34, 0
    %s37 = sadd.s32 %s36, 1
    %s38 = scalar_select %p35, %s36, %s37
    %p41 = pneg %p35
    %p42 = scmp.eq.s32.totalorder %s12, 1
    %p43 = por %p41, %p42
    %p44 = scmp.ne.s32.totalorder %s36, %s39
    %p45 = scmp.eq.s32.totalorder %s12, 0
    %p46 = por %p44, %p45
    %p47 = scmp.ne.s32.totalorder %s36, %s39
    %p48 = scmp.eq.s32.totalorder %s17, 1
    %p49 = por %p47, %p48
    %p50 = scmp.ne.s32.totalorder %s39, %s40
    %p51 = scmp.eq.s32.totalorder %s17, 0
    %p52 = por %p50, %p51
    %p53 = scmp.ne.s32.totalorder %s39, %s40
    %p54 = scmp.eq.s32.totalorder %s18, 1
    %p55 = por %p53, %p54
    %p57 = scmp.ne.s32.totalorder %s40, %s56
    %p58 = scmp.eq.s32.totalorder %s18, 0
    %p59 = por %p57, %p58
    %s60 = sadd.s32 %s19, %s20
    %s61 = sadd.s32 %s31, %s27
    %s62 = ssub.s32 %s60, %s61
    %p63 = scmp.eq.s32.totalorder %s62, 0
    %s65 = sadd.s32 %s64, 1
    %s66 = scalar_select %p63, %s64, %s65
    %p69 = pneg %p63
    %p70 = scmp.eq.s32.totalorder %s12, 1
    %p71 = por %p69, %p70
    %p72 = scmp.ne.s32.totalorder %s64, %s67
    %p73 = scmp.eq.s32.totalorder %s12, 0
    %p74 = por %p72, %p73
    %p75 = scmp.ne.s32.totalorder %s64, %s67
    %p76 = scmp.eq.s32.totalorder %s17, 1
    %p77 = por %p75, %p76
    %p78 = scmp.ne.s32.totalorder %s67, %s68
    %p79 = scmp.eq.s32.totalorder %s17, 0
    %p80 = por %p78, %p79
    %p81 = scmp.ne.s32.totalorder %s67, %s68
    %p82 = scmp.eq.s32.totalorder %s18, 1
    %p83 = por %p81, %p82
    %p85 = scmp.ne.s32.totalorder %s68, %s84
    %p86 = scmp.eq.s32.totalorder %s18, 0
    %p87 = por %p85, %p86
    %s88 = sadd.s32 %s19, %s20
    %s89 = sadd.s32 %s31, %s27
    %s90 = ssub.s32 %s88, %s89
    %p91 = scmp.eq.s32.totalorder %s90, 0
    %s93 = sadd.s32 %s92, 1
    %s94 = scalar_select %p91, %s92, %s93
    %p97 = pneg %p91
    %p98 = scmp.eq.s32.totalorder %s12, 1
    %p99 = por %p97, %p98
    %p100 = scmp.ne.s32.totalorder %s92, %s95
    %p101 = scmp.eq.s32.totalorder %s12, 0
    %p102 = por %p100, %p101
    %p103 = scmp.ne.s32.totalorder %s92, %s95
    %p104 = scmp.eq.s32.totalorder %s17, 1
    %p105 = por %p103, %p104
    %p106 = scmp.ne.s32.totalorder %s95, %s96
    %p107 = scmp.eq.s32.totalorder %s17, 0
    %p108 = por %p106, %p107
    %p109 = scmp.ne.s32.totalorder %s95, %s96
    %p110 = scmp.eq.s32.totalorder %s18, 1
    %p111 = por %p109, %p110
    %p113 = scmp.ne.s32.totalorder %s96, %s112
    %p114 = scmp.eq.s32.totalorder %s18, 0
    %p115 = por %p113, %p114
    %s116 = ssub.s32 %s19, %s31
    %p117 = scmp.eq.s32.totalorder %s116, 0
    %s119 = sadd.s32 %s118, 1
    %s120 = scalar_select %p117, %s118, %s119
    %p123 = pneg %p117
    %p124 = scmp.eq.s32.totalorder %s12, 1
    %p125 = por %p123, %p124
    %p126 = scmp.ne.s32.totalorder %s118, %s121
    %p127 = scmp.eq.s32.totalorder %s12, 0
    %p128 = por %p126, %p127
    %p129 = scmp.ne.s32.totalorder %s118, %s121
    %p130 = scmp.eq.s32.totalorder %s17, 1
    %p131 = por %p129, %p130
    %p132 = scmp.ne.s32.totalorder %s121, %s122
    %p133 = scmp.eq.s32.totalorder %s17, 0
    %p134 = por %p132, %p133
    %p135 = scmp.ne.s32.totalorder %s121, %s122
    %p136 = scmp.eq.s32.totalorder %s18, 1
    %p137 = por %p135, %p136
    %p139 = scmp.ne.s32.totalorder %s122, %s138
    %p140 = scmp.eq.s32.totalorder %s18, 0
    %p141 = por %p139, %p140
    %s142 = ssub.s32 %s19, %s31
    %p143 = scmp.eq.s32.totalorder %s142, 0
    %s145 = sadd.s32 %s144, 1
    %s146 = scalar_select %p143, %s144, %s145
    %p149 = pneg %p143
    %p150 = scmp.eq.s32.totalorder %s12, 1
    %p151 = por %p149, %p150
    %p152 = scmp.ne.s32.totalorder %s144, %s147
    %p153 = scmp.eq.s32.totalorder %s12, 0
    %p154 = por %p152, %p153
    %p155 = scmp.ne.s32.totalorder %s144, %s147
    %p156 = scmp.eq.s32.totalorder %s17, 1
    %p157 = por %p155, %p156
    %p158 = scmp.ne.s32.totalorder %s147, %s148
    %p159 = scmp.eq.s32.totalorder %s17, 0
    %p160 = por %p158, %p159
    %p161 = scmp.ne.s32.totalorder %s147, %s148
    %p162 = scmp.eq.s32.totalorder %s18, 1
    %p163 = por %p161, %p162
    %p165 = scmp.ne.s32.totalorder %s148, %s164
    %p166 = scmp.eq.s32.totalorder %s18, 0
    %p167 = por %p165, %p166
    %s168 = ssub.s32 %s19, %s31
    %p169 = scmp.eq.s32.totalorder %s168, 0
    %s171 = sadd.s32 %s170, 1
    %s172 = scalar_select %p169, %s170, %s171
    %p175 = pneg %p169
    %p176 = scmp.eq.s32.totalorder %s12, 1
    %p177 = por %p175, %p176
    %p178 = scmp.ne.s32.totalorder %s170, %s173
    %p179 = scmp.eq.s32.totalorder %s12, 0
    %p180 = por %p178, %p179
    %p181 = scmp.ne.s32.totalorder %s170, %s173
    %p182 = scmp.eq.s32.totalorder %s17, 1
    %p183 = por %p181, %p182
    %p184 = scmp.ne.s32.totalorder %s173, %s174
    %p185 = scmp.eq.s32.totalorder %s17, 0
    %p186 = por %p184, %p185
    %p187 = scmp.ne.s32.totalorder %s173, %s174
    %p188 = scmp.eq.s32.totalorder %s18, 1
    %p189 = por %p187, %p188
    %p191 = scmp.ne.s32.totalorder %s174, %s190
    %p192 = scmp.eq.s32.totalorder %s18, 0
    %p193 = por %p191, %p192
    %p194 = scmp.le.s32.totalorder 1, %s12
    %p195 = scmp.lt.s32.totalorder %s12, 3
    %p196 = pnand %p194, %p195
    %p197 = pneg %p196
    // Predicated region
    $region9: #{_level_pool_padded.1} parent=5 // pred_check
      _
    $region10: #{_level_pool_padded.1} parent=5 // pred_check_branch
      %199 = sbr.rel (%p196) target = $region12
    $region11: #{_level_pool_padded.1} parent=5 // pred_region
      %s200 = ssub.s32 %s12, 1
    $region12: #{_level_pool_padded.1} parent=5 // pred_fallthru
      _
    %p201 = scmp.lt.s32.totalorder %s12, 2
    // Predicated region
    $region13: #{_level_pool_padded.1} parent=5 // pred_check
      %p202 = pneg %p201
    $region14: #{_level_pool_padded.1} parent=5 // pred_check_branch
      %204 = sbr.rel (%p202) target = $region16
    $region15: #{_level_pool_padded.1} parent=5 // pred_region
      // Predicated region
      $region17: #{_level_pool_padded.1} parent=15 // pred_check
        %p205 = pneg %p46
      $region18: #{_level_pool_padded.1} parent=15 // pred_check_branch
        %207 = sbr.rel (%p205) target = $region20
      $region19: #{_level_pool_padded.1} parent=15 // pred_region
        %s208 = sadd.s32 %s19, %s20
        %s209 = smul.u32 16, %s208
        %p210 = scmp.lt.s32.totalorder %s209, 31
        %s211 = scalar_select %p210, %s209, 31
        %s212 = smul.addr %s211, 8
        %s213 = scalar_lea.vmem %s0, %s212
        %s214 = sadd.s32 %s19, %s20
        %s215 = smul.u32 16, %s214
      $region20: #{_level_pool_padded.1} parent=15 // pred_fallthru
        _
      // Predicated region
      $region21: #{_level_pool_padded.1} parent=15 // pred_check
        %p216 = pneg %p74
      $region22: #{_level_pool_padded.1} parent=15 // pred_check_branch
        %218 = sbr.rel (%p216) target = $region24
      $region23: #{_level_pool_padded.1} parent=15 // pred_region
        %s219 = sadd.s32 %s19, %s20
        %p220 = scmp.lt.s32.totalorder %s219, 1
        %s221 = scalar_select %p220, %s219, 1
        %s222 = scalar_lea.vmem %s1, %s221
        %s223 = sadd.s32 %s19, %s20
      $region24: #{_level_pool_padded.1} parent=15 // pred_fallthru
        _
      // Predicated region
      $region25: #{_level_pool_padded.1} parent=15 // pred_check
        %p224 = pneg %p102
      $region26: #{_level_pool_padded.1} parent=15 // pred_check_branch
        %226 = sbr.rel (%p224) target = $region28
      $region27: #{_level_pool_padded.1} parent=15 // pred_region
        %s227 = sadd.s32 %s19, %s20
        %s228 = smul.u32 16, %s227
        %p229 = scmp.lt.s32.totalorder %s228, 31
        %s230 = scalar_select %p229, %s228, 31
        %s231 = smul.addr %s230, 8
        %s232 = scalar_lea.vmem %s2, %s231
        %s233 = sadd.s32 %s19, %s20
        %s234 = smul.u32 16, %s233
      $region28: #{_level_pool_padded.1} parent=15 // pred_fallthru
        _
    $region16: #{_level_pool_padded.1} parent=5 // pred_fallthru
      _
    %p235 = scmp.le.s32.totalorder 1, %s12
    %p236 = scmp.lt.s32.totalorder %s12, 3
    %p237 = pnand %p235, %p236
    %p238 = pneg %p237
    // Predicated region
    $region29: #{_level_pool_padded.1} parent=5 // pred_check
      _
    $region30: #{_level_pool_padded.1} parent=5 // pred_check_branch
      %240 = sbr.rel (%p237) target = $region32
    $region31: #{_level_pool_padded.1} parent=5 // pred_region
      %s241 = ssub.s32 %s12, 1
      %s242 = sadd.s32 %s21, %s22
      %s243 = smul.u32 16, %s242
      %p244 = scmp.lt.s32.totalorder %s243, 31
      %s245 = scalar_select %p244, %s243, 31
      %s246 = smul.addr %s245, 8
      %s247 = scalar_lea.vmem %s0, %s246
      %p248 = pneg %p52
      %p249 = pneg %p49
      %s250 = sadd.s32 %s21, %s22
      %p251 = scmp.lt.s32.totalorder %s250, 1
      %s252 = scalar_select %p251, %s250, 1
      %s253 = scalar_lea.vmem %s1, %s252
      %p254 = pneg %p80
      %p255 = pneg %p77
      %s256 = sadd.s32 %s21, %s22
      %s257 = smul.u32 16, %s256
      %p258 = scmp.lt.s32.totalorder %s257, 31
      %s259 = scalar_select %p258, %s257, 31
      %s260 = smul.addr %s259, 8
      %s261 = scalar_lea.vmem %s2, %s260
      %p262 = pneg %p108
      %p263 = pneg %p105
      %p264 = pneg %p134
      %p265 = pneg %p131
      %p266 = scmp.lt.s32.totalorder %s21, 1
      %s267 = scalar_select %p266, %s21, 1
      %s268 = smul.addr %s267, 8
      %s269 = scalar_lea.vmem %s3, %s268
      %p270 = pneg %p160
      %p271 = pneg %p157
      %p272 = scmp.lt.s32.totalorder %s21, 1
      %s273 = scalar_select %p272, %s21, 1
      %s274 = smul.addr %s273, 8
      %s275 = scalar_lea.vmem %s4, %s274
      %p276 = pneg %p186
      %p277 = pneg %p183
      %p278 = scmp.lt.s32.totalorder %s21, 1
      %s279 = scalar_select %p278, %s21, 1
      %s280 = smul.addr %s279, 8
      %s281 = scalar_lea.vmem %s5, %s280
      %s282 = sadd.s32 %s21, %s22
      %s283 = smul.u32 16, %s282
      %p284 = scmp.lt.s32.totalorder %s283, 31
      %s285 = scalar_select %p284, %s283, 31
      %s286 = smul.addr %s285, 8
      %s287 = scalar_lea.vmem %s0, %s286
      %s288 = sadd.s32 %s21, %s22
      %s289 = smul.u32 16, %s288
      %s290 = sadd.s32 %s21, %s22
      %p291 = scmp.lt.s32.totalorder %s290, 1
      %s292 = scalar_select %p291, %s290, 1
      %s293 = scalar_lea.vmem %s1, %s292
      %s294 = sadd.s32 %s21, %s22
      %s295 = sadd.s32 %s21, %s22
      %s296 = smul.u32 16, %s295
      %p297 = scmp.lt.s32.totalorder %s296, 31
      %s298 = scalar_select %p297, %s296, 31
      %s299 = smul.addr %s298, 8
      %s300 = scalar_lea.vmem %s2, %s299
      %s301 = sadd.s32 %s21, %s22
      %s302 = smul.u32 16, %s301
      %p303 = scmp.lt.s32.totalorder %s21, 1
      %s304 = scalar_select %p303, %s21, 1
      %s305 = smul.addr %s304, 8
      %s306 = scalar_lea.vmem %s3, %s305
      %p307 = scmp.lt.s32.totalorder %s21, 1
      %s308 = scalar_select %p307, %s21, 1
      %s309 = smul.addr %s308, 8
      %s310 = scalar_lea.vmem %s4, %s309
      %p311 = scmp.lt.s32.totalorder %s21, 1
      %s312 = scalar_select %p311, %s21, 1
      %s313 = smul.addr %s312, 8
      %s314 = scalar_lea.vmem %s5, %s313
      %p315 = scmp.eq.s32.totalorder %s22, 0
      // Predicated region
      $region33: #{_level_pool_padded.1} parent=31 // pred_check
        %p316 = pneg %p315
      $region34: #{_level_pool_padded.1} parent=31 // pred_check_branch
        %318 = sbr.rel (%p316) target = $region36
      $region35: #{_level_pool_padded.1} parent=31 // pred_region
        %319 = vst [vmem:[%s306] sm:$0xff] 0.0
        %vm320 = vcmask 7168
        %321 = vst.msk [vmem:[%s310] sm:$0xff] %vm320, 0.0
        %322 = vst [vmem:[%s314] sm:$0xff] -inf
      $region36: #{_level_pool_padded.1} parent=31 // pred_fallthru
        _
      %v323 = vld [vmem:[%s293] sm:$0x1]
      %v324 = vlaneseq
      %v325 = vshrl.u32 %v324, 7
      %v326 = vlaneseq
      %v327 = vshrl.u32 %v326, 7
      %v328 = vsub.s32 0, %v327
      %v329 = vrot.slane %v323, %v328
      %vm330 = vcmp.eq.s32.totalorder %v325, %v329
      %v331 = vsel %vm330, 1, 0
      %v332 = vcvt.s32.f32 %v331
      %v333 = vld [vmem:[%s310] sm:$0xff]
      %334 = vadd.xlane.f32.xlu0 %v332
      %v335 = vpop.xlane.xlu0 %334
      %v336 = vadd.f32 %v333, %v335
      %vm337 = vcmask 7168
      %338 = vst.msk [vmem:[%s310] sm:$0xff] %vm337, %v336
      %v339 = vld [vmem:[%s306] sm:$0xff]
      %v340 = vld [vmem:[%s287] sm:$0xff]
      %v341 = vld [vmem:[%s287 + $0x8] sm:$0xff]
      %v342 = vld [vmem:[%s287 + $0x10] sm:$0xff]
      %v343 = vld [vmem:[%s287 + $0x18] sm:$0xff]
      %v344 = vld [vmem:[%s287 + $0x20] sm:$0xff]
      %v345 = vld [vmem:[%s287 + $0x28] sm:$0xff]
      %v346 = vld [vmem:[%s287 + $0x30] sm:$0xff]
      %v347 = vld [vmem:[%s287 + $0x38] sm:$0xff]
      %v348 = vld [vmem:[%s287 + $0x40] sm:$0xff]
      %v349 = vld [vmem:[%s287 + $0x48] sm:$0xff]
      %v350 = vld [vmem:[%s287 + $0x50] sm:$0xff]
      %v351 = vld [vmem:[%s287 + $0x58] sm:$0xff]
      %v352 = vld [vmem:[%s287 + $0x60] sm:$0xff]
      %v353 = vld [vmem:[%s287 + $0x68] sm:$0xff]
      %v354 = vld [vmem:[%s287 + $0x70] sm:$0xff]
      %v355 = vld [vmem:[%s287 + $0x78] sm:$0xff]
      %356 = vmatprep.subr.mxu0 0.0
      %357 = vmatpush1.msra.mxu0 %v340
      %358 = vmatprep.subr.mxu0 0.0
      %359 = vmatpush1.msra.mxu0 %v341
      %360 = vmatprep.subr.mxu0 0.0
      %361 = vmatpush1.msra.mxu0 %v342
      %362 = vmatprep.subr.mxu0 0.0
      %363 = vmatpush1.msra.mxu0 %v343
      %364 = vmatprep.subr.mxu0 0.0
      %365 = vmatpush1.msra.mxu0 %v344
      %366 = vmatprep.subr.mxu0 0.0
      %367 = vmatpush1.msra.mxu0 %v345
      %368 = vmatprep.subr.mxu0 0.0
      %369 = vmatpush1.msra.mxu0 %v346
      %370 = vmatprep.subr.mxu0 0.0
      %371 = vmatpush1.msra.mxu0 %v347
      %372 = vmatprep.subr.mxu0 0.0
      %373 = vmatpush1.msra.mxu0 %v348
      %374 = vmatprep.subr.mxu0 0.0
      %375 = vmatpush1.msra.mxu0 %v349
      %376 = vmatprep.subr.mxu0 0.0
      %377 = vmatpush1.msra.mxu0 %v350
      %378 = vmatprep.subr.mxu0 0.0
      %379 = vmatpush1.msra.mxu0 %v351
      %380 = vmatprep.subr.mxu0 0.0
      %381 = vmatpush1.msra.mxu0 %v352
      %382 = vmatprep.subr.mxu0 0.0
      %383 = vmatpush1.msra.mxu0 %v353
      %384 = vmatprep.subr.mxu0 0.0
      %385 = vmatpush1.msra.mxu0 %v354
      %386 = vmatprep.subr.mxu0 0.0
      %387 = vmatpush1.msra.mxu0 %v355
      %388 = vmatprep.subr.mxu0 0.0
      %389 = vmatpush1.msra.mxu0 0.0
      %390 = vmatprep.subr.mxu0 0.0
      %391 = vmatpush1.msra.mxu0 0.0
      %392 = vmatprep.subr.mxu0 0.0
      %393 = vmatpush1.msra.mxu0 0.0
      %394 = vmatprep.subr.mxu0 0.0
      %395 = vmatpush1.msra.mxu0 0.0
      %396 = vmatprep.subr.mxu0 0.0
      %397 = vmatpush1.msra.mxu0 0.0
      %398 = vmatprep.subr.mxu0 0.0
      %399 = vmatpush1.msra.mxu0 0.0
      %400 = vmatprep.subr.mxu0 0.0
      %401 = vmatpush1.msra.mxu0 0.0
      %402 = vmatprep.subr.mxu0 0.0
      %403 = vmatpush1.msra.mxu0 0.0
      %404 = vmatprep.subr.mxu0 0.0
      %405 = vmatpush1.msra.mxu0 0.0
      %406 = vmatprep.subr.mxu0 0.0
      %407 = vmatpush1.msra.mxu0 0.0
      %408 = vmatprep.subr.mxu0 0.0
      %409 = vmatpush1.msra.mxu0 0.0
      %410 = vmatprep.subr.mxu0 0.0
      %411 = vmatpush1.msra.mxu0 0.0
      %412 = vmatprep.subr.mxu0 0.0
      %413 = vmatpush1.msra.mxu0 0.0
      %414 = vmatprep.subr.mxu0 0.0
      %415 = vmatpush1.msra.mxu0 0.0
      %416 = vmatprep.subr.mxu0 0.0
      %417 = vmatpush1.msra.mxu0 0.0
      %418 = vmatprep.subr.mxu0 0.0
      %419 = vmatpush1.msra.mxu0 0.0
      %420 = vmatprep.mubr.f32.mxu0 0.0
      %421 = vmatmul.mubr.f32.gmra.mrb[0].mxu0 %v332
      %v422 = vpop.f32.mrb[0].mxu0
      %v423 = vadd.f32 0.0, %v422
      %v424 = vpop.f32.mrb[0].mxu0
      %425 = vdwg.mxu0
      %v426 = vadd.f32 %v339, %v423
      %427 = vst [vmem:[%s306] sm:$0xff] %v426
      %v428 = vld [vmem:[%s287] sm:$0xff]
      %v429 = vld [vmem:[%s287 + $0x8] sm:$0xff]
      %v430 = vld [vmem:[%s300] sm:$0xff]
      %v431 = vld [vmem:[%s300 + $0x8] sm:$0xff]
      %vm432 = vcmp.eq.s32.totalorder %v430, 0
      %vm433 = vcmp.eq.s32.totalorder %v431, 0
      %vm434 = vcmp.eq.s32.totalorder %v430, 1
      %vm435 = vcmp.eq.s32.totalorder %v431, 1
      %vm436 = vcmp.eq.s32.totalorder %v430, 2
      %vm437 = vcmp.eq.s32.totalorder %v431, 2
      %vm438 = vcmp.eq.s32.totalorder %v430, 3
      %vm439 = vcmp.eq.s32.totalorder %v431, 3
      %vm440 = vcmp.eq.s32.totalorder %v430, 4
      %vm441 = vcmp.eq.s32.totalorder %v431, 4
      %vm442 = vcmp.eq.s32.totalorder %v430, 5
      %vm443 = vcmp.eq.s32.totalorder %v431, 5
      %vm444 = vcmp.eq.s32.totalorder %v430, 6
      %vm445 = vcmp.eq.s32.totalorder %v431, 6
      %vm446 = vcmp.eq.s32.totalorder %v430, 7
      %vm447 = vcmp.eq.s32.totalorder %v431, 7
      %v448 = vsel %vm432, 1, 0
      %v449 = vsel %vm433, 1, 0
      %v450 = vsel %vm434, 1, 0
      %v451 = vsel %vm435, 1, 0
      %v452 = vsel %vm436, 1, 0
      %v453 = vsel %vm437, 1, 0
      %v454 = vsel %vm438, 1, 0
      %v455 = vsel %vm439, 1, 0
      %v456 = vsel %vm440, 1, 0
      %v457 = vsel %vm441, 1, 0
      %v458 = vsel %vm442, 1, 0
      %v459 = vsel %vm443, 1, 0
      %v460 = vsel %vm444, 1, 0
      %v461 = vsel %vm445, 1, 0
      %v462 = vsel %vm446, 1, 0
      %v463 = vsel %vm447, 1, 0
      %464 = vset.pattern.permute.xlu0 0
      %465 = vperm.xlu0 %464, %v448
      %v466 = vpop.permute.xlu0 %465
      %467 = vset.pattern.permute.xlu0 0
      %468 = vperm.xlu0 %467, %v449
      %v469 = vpop.permute.xlu0 %468
      %470 = vset.pattern.permute.xlu0 0
      %471 = vperm.xlu0 %470, %v450
      %v472 = vpop.permute.xlu0 %471
      %473 = vset.pattern.permute.xlu0 0
      %474 = vperm.xlu0 %473, %v451
      %v475 = vpop.permute.xlu0 %474
      %476 = vset.pattern.permute.xlu0 0
      %477 = vperm.xlu0 %476, %v452
      %v478 = vpop.permute.xlu0 %477
      %479 = vset.pattern.permute.xlu0 0
      %480 = vperm.xlu0 %479, %v453
      %v481 = vpop.permute.xlu0 %480
      %482 = vset.pattern.permute.xlu0 0
      %483 = vperm.xlu0 %482, %v454
      %v484 = vpop.permute.xlu0 %483
      %485 = vset.pattern.permute.xlu0 0
      %486 = vperm.xlu0 %485, %v455
      %v487 = vpop.permute.xlu0 %486
      %488 = vset.pattern.permute.xlu0 0
      %489 = vperm.xlu0 %488, %v456
      %v490 = vpop.permute.xlu0 %489
      %491 = vset.pattern.permute.xlu0 0
      %492 = vperm.xlu0 %491, %v457
      %v493 = vpop.permute.xlu0 %492
      %494 = vset.pattern.permute.xlu0 0
      %495 = vperm.xlu0 %494, %v458
      %v496 = vpop.permute.xlu0 %495
      %497 = vset.pattern.permute.xlu0 0
      %498 = vperm.xlu0 %497, %v459
      %v499 = vpop.permute.xlu0 %498
      %500 = vset.pattern.permute.xlu0 0
      %501 = vperm.xlu0 %500, %v460
      %v502 = vpop.permute.xlu0 %501
      %503 = vset.pattern.permute.xlu0 0
      %504 = vperm.xlu0 %503, %v461
      %v505 = vpop.permute.xlu0 %504
      %506 = vset.pattern.permute.xlu0 0
      %507 = vperm.xlu0 %506, %v462
      %v508 = vpop.permute.xlu0 %507
      %509 = vset.pattern.permute.xlu0 0
      %510 = vperm.xlu0 %509, %v463
      %v511 = vpop.permute.xlu0 %510
      %vm512 = vcmp.eq.s32.totalorder %v466, 1
      %vm513 = vcmp.eq.s32.totalorder %v469, 1
      %vm514 = vcmp.eq.s32.totalorder %v472, 1
      %vm515 = vcmp.eq.s32.totalorder %v475, 1
      %vm516 = vcmp.eq.s32.totalorder %v478, 1
      %vm517 = vcmp.eq.s32.totalorder %v481, 1
      %vm518 = vcmp.eq.s32.totalorder %v484, 1
      %vm519 = vcmp.eq.s32.totalorder %v487, 1
      %vm520 = vcmp.eq.s32.totalorder %v490, 1
      %vm521 = vcmp.eq.s32.totalorder %v493, 1
      %vm522 = vcmp.eq.s32.totalorder %v496, 1
      %vm523 = vcmp.eq.s32.totalorder %v499, 1
      %vm524 = vcmp.eq.s32.totalorder %v502, 1
      %vm525 = vcmp.eq.s32.totalorder %v505, 1
      %vm526 = vcmp.eq.s32.totalorder %v508, 1
      %vm527 = vcmp.eq.s32.totalorder %v511, 1
      %v528 = vsel %vm512, %v428, -inf
      %v529 = vsel %vm513, %v429, -inf
      %v530 = vsel %vm514, %v428, -inf
      %v531 = vsel %vm515, %v429, -inf
      %v532 = vsel %vm516, %v428, -inf
      %v533 = vsel %vm517, %v429, -inf
      %v534 = vsel %vm518, %v428, -inf
      %v535 = vsel %vm519, %v429, -inf
      %v536 = vsel %vm520, %v428, -inf
      %v537 = vsel %vm521, %v429, -inf
      %v538 = vsel %vm522, %v428, -inf
      %v539 = vsel %vm523, %v429, -inf
      %v540 = vsel %vm524, %v428, -inf
      %v541 = vsel %vm525, %v429, -inf
      %v542 = vsel %vm526, %v428, -inf
      %v543 = vsel %vm527, %v429, -inf
      %v544 = vmax.f32 %v528, %v529
      %v545 = vrot.slane %v544, 4
      %v546 = vmax.f32 %v544, %v545
      %v547 = vrot.slane %v546, 2
      %v548 = vmax.f32 %v546, %v547
      %v549 = vrot.slane %v548, 1
      %v550 = vmax.f32 %v548, %v549
      %v551 = vmax.f32 %v530, %v531
      %v552 = vrot.slane %v551, 4
      %v553 = vmax.f32 %v551, %v552
      %v554 = vrot.slane %v553, 2
      %v555 = vmax.f32 %v553, %v554
      %v556 = vrot.slane %v555, 1
      %v557 = vmax.f32 %v555, %v556
      %v558 = vmax.f32 %v532, %v533
      %v559 = vrot.slane %v558, 4
      %v560 = vmax.f32 %v558, %v559
      %v561 = vrot.slane %v560, 2
      %v562 = vmax.f32 %v560, %v561
      %v563 = vrot.slane %v562, 1
      %v564 = vmax.f32 %v562, %v563
      %v565 = vmax.f32 %v534, %v535
      %v566 = vrot.slane %v565, 4
      %v567 = vmax.f32 %v565, %v566
      %v568 = vrot.slane %v567, 2
      %v569 = vmax.f32 %v567, %v568
      %v570 = vrot.slane %v569, 1
      %v571 = vmax.f32 %v569, %v570
      %v572 = vmax.f32 %v536, %v537
      %v573 = vrot.slane %v572, 4
      %v574 = vmax.f32 %v572, %v573
      %v575 = vrot.slane %v574, 2
      %v576 = vmax.f32 %v574, %v575
      %v577 = vrot.slane %v576, 1
      %v578 = vmax.f32 %v576, %v577
      %v579 = vmax.f32 %v538, %v539
      %v580 = vrot.slane %v579, 4
      %v581 = vmax.f32 %v579, %v580
      %v582 = vrot.slane %v581, 2
      %v583 = vmax.f32 %v581, %v582
      %v584 = vrot.slane %v583, 1
      %v585 = vmax.f32 %v583, %v584
      %v586 = vmax.f32 %v540, %v541
      %v587 = vrot.slane %v586, 4
      %v588 = vmax.f32 %v586, %v587
      %v589 = vrot.slane %v588, 2
      %v590 = vmax.f32 %v588, %v589
      %v591 = vrot.slane %v590, 1
      %v592 = vmax.f32 %v590, %v591
      %v593 = vmax.f32 %v542, %v543
      %v594 = vrot.slane %v593, 4
      %v595 = vmax.f32 %v593, %v594
      %v596 = vrot.slane %v595, 2
      %v597 = vmax.f32 %v595, %v596
      %v598 = vrot.slane %v597, 1
      %v599 = vmax.f32 %v597, %v598
      %v600 = vld [vmem:[%s287 + $0x10] sm:$0xff]
      %v601 = vld [vmem:[%s287 + $0x18] sm:$0xff]
      %v602 = vld [vmem:[%s300 + $0x10] sm:$0xff]
      %v603 = vld [vmem:[%s300 + $0x18] sm:$0xff]
      %vm604 = vcmp.eq.s32.totalorder %v602, 0
      %vm605 = vcmp.eq.s32.totalorder %v603, 0
      %vm606 = vcmp.eq.s32.totalorder %v602, 1
      %vm607 = vcmp.eq.s32.totalorder %v603, 1
      %vm608 = vcmp.eq.s32.totalorder %v602, 2
      %vm609 = vcmp.eq.s32.totalorder %v603, 2
      %vm610 = vcmp.eq.s32.totalorder %v602, 3
      %vm611 = vcmp.eq.s32.totalorder %v603, 3
      %vm612 = vcmp.eq.s32.totalorder %v602, 4
      %vm613 = vcmp.eq.s32.totalorder %v603, 4
      %vm614 = vcmp.eq.s32.totalorder %v602, 5
      %vm615 = vcmp.eq.s32.totalorder %v603, 5
      %vm616 = vcmp.eq.s32.totalorder %v602, 6
      %vm617 = vcmp.eq.s32.totalorder %v603, 6
      %vm618 = vcmp.eq.s32.totalorder %v602, 7
      %vm619 = vcmp.eq.s32.totalorder %v603, 7
      %v620 = vsel %vm604, 1, 0
      %v621 = vsel %vm605, 1, 0
      %v622 = vsel %vm606, 1, 0
      %v623 = vsel %vm607, 1, 0
      %v624 = vsel %vm608, 1, 0
      %v625 = vsel %vm609, 1, 0
      %v626 = vsel %vm610, 1, 0
      %v627 = vsel %vm611, 1, 0
      %v628 = vsel %vm612, 1, 0
      %v629 = vsel %vm613, 1, 0
      %v630 = vsel %vm614, 1, 0
      %v631 = vsel %vm615, 1, 0
      %v632 = vsel %vm616, 1, 0
      %v633 = vsel %vm617, 1, 0
      %v634 = vsel %vm618, 1, 0
      %v635 = vsel %vm619, 1, 0
      %636 = vset.pattern.permute.xlu0 0
      %637 = vperm.xlu0 %636, %v620
      %v638 = vpop.permute.xlu0 %637
      %639 = vset.pattern.permute.xlu0 0
      %640 = vperm.xlu0 %639, %v621
      %v641 = vpop.permute.xlu0 %640
      %642 = vset.pattern.permute.xlu0 0
      %643 = vperm.xlu0 %642, %v622
      %v644 = vpop.permute.xlu0 %643
      %645 = vset.pattern.permute.xlu0 0
      %646 = vperm.xlu0 %645, %v623
      %v647 = vpop.permute.xlu0 %646
      %648 = vset.pattern.permute.xlu0 0
      %649 = vperm.xlu0 %648, %v624
      %v650 = vpop.permute.xlu0 %649
      %651 = vset.pattern.permute.xlu0 0
      %652 = vperm.xlu0 %651, %v625
      %v653 = vpop.permute.xlu0 %652
      %654 = vset.pattern.permute.xlu0 0
      %655 = vperm.xlu0 %654, %v626
      %v656 = vpop.permute.xlu0 %655
      %657 = vset.pattern.permute.xlu0 0
      %658 = vperm.xlu0 %657, %v627
      %v659 = vpop.permute.xlu0 %658
      %660 = vset.pattern.permute.xlu0 0
      %661 = vperm.xlu0 %660, %v628
      %v662 = vpop.permute.xlu0 %661
      %663 = vset.pattern.permute.xlu0 0
      %664 = vperm.xlu0 %663, %v629
      %v665 = vpop.permute.xlu0 %664
      %666 = vset.pattern.permute.xlu0 0
      %667 = vperm.xlu0 %666, %v630
      %v668 = vpop.permute.xlu0 %667
      %669 = vset.pattern.permute.xlu0 0
      %670 = vperm.xlu0 %669, %v631
      %v671 = vpop.permute.xlu0 %670
      %672 = vset.pattern.permute.xlu0 0
      %673 = vperm.xlu0 %672, %v632
      %v674 = vpop.permute.xlu0 %673
      %675 = vset.pattern.permute.xlu0 0
      %676 = vperm.xlu0 %675, %v633
      %v677 = vpop.permute.xlu0 %676
      %678 = vset.pattern.permute.xlu0 0
      %679 = vperm.xlu0 %678, %v634
      %v680 = vpop.permute.xlu0 %679
      %681 = vset.pattern.permute.xlu0 0
      %682 = vperm.xlu0 %681, %v635
      %v683 = vpop.permute.xlu0 %682
      %vm684 = vcmp.eq.s32.totalorder %v638, 1
      %vm685 = vcmp.eq.s32.totalorder %v641, 1
      %vm686 = vcmp.eq.s32.totalorder %v644, 1
      %vm687 = vcmp.eq.s32.totalorder %v647, 1
      %vm688 = vcmp.eq.s32.totalorder %v650, 1
      %vm689 = vcmp.eq.s32.totalorder %v653, 1
      %vm690 = vcmp.eq.s32.totalorder %v656, 1
      %vm691 = vcmp.eq.s32.totalorder %v659, 1
      %vm692 = vcmp.eq.s32.totalorder %v662, 1
      %vm693 = vcmp.eq.s32.totalorder %v665, 1
      %vm694 = vcmp.eq.s32.totalorder %v668, 1
      %vm695 = vcmp.eq.s32.totalorder %v671, 1
      %vm696 = vcmp.eq.s32.totalorder %v674, 1
      %vm697 = vcmp.eq.s32.totalorder %v677, 1
      %vm698 = vcmp.eq.s32.totalorder %v680, 1
      %vm699 = vcmp.eq.s32.totalorder %v683, 1
      %v700 = vsel %vm684, %v600, -inf
      %v701 = vsel %vm685, %v601, -inf
      %v702 = vsel %vm686, %v600, -inf
      %v703 = vsel %vm687, %v601, -inf
      %v704 = vsel %vm688, %v600, -inf
      %v705 = vsel %vm689, %v601, -inf
      %v706 = vsel %vm690, %v600, -inf
      %v707 = vsel %vm691, %v601, -inf
      %v708 = vsel %vm692, %v600, -inf
      %v709 = vsel %vm693, %v601, -inf
      %v710 = vsel %vm694, %v600, -inf
      %v711 = vsel %vm695, %v601, -inf
      %v712 = vsel %vm696, %v600, -inf
      %v713 = vsel %vm697, %v601, -inf
      %v714 = vsel %vm698, %v600, -inf
      %v715 = vsel %vm699, %v601, -inf
      %v716 = vmax.f32 %v700, %v701
      %v717 = vrot.slane %v716, 4
      %v718 = vmax.f32 %v716, %v717
      %v719 = vrot.slane %v718, 2
      %v720 = vmax.f32 %v718, %v719
      %v721 = vrot.slane %v720, 1
      %v722 = vmax.f32 %v720, %v721
      %v723 = vmax.f32 %v702, %v703
      %v724 = vrot.slane %v723, 4
      %v725 = vmax.f32 %v723, %v724
      %v726 = vrot.slane %v725, 2
      %v727 = vmax.f32 %v725, %v726
      %v728 = vrot.slane %v727, 1
      %v729 = vmax.f32 %v727, %v728
      %v730 = vmax.f32 %v704, %v705
      %v731 = vrot.slane %v730, 4
      %v732 = vmax.f32 %v730, %v731
      %v733 = vrot.slane %v732, 2
      %v734 = vmax.f32 %v732, %v733
      %v735 = vrot.slane %v734, 1
      %v736 = vmax.f32 %v734, %v735
      %v737 = vmax.f32 %v706, %v707
      %v738 = vrot.slane %v737, 4
      %v739 = vmax.f32 %v737, %v738
      %v740 = vrot.slane %v739, 2
      %v741 = vmax.f32 %v739, %v740
      %v742 = vrot.slane %v741, 1
      %v743 = vmax.f32 %v741, %v742
      %v744 = vmax.f32 %v708, %v709
      %v745 = vrot.slane %v744, 4
      %v746 = vmax.f32 %v744, %v745
      %v747 = vrot.slane %v746, 2
      %v748 = vmax.f32 %v746, %v747
      %v749 = vrot.slane %v748, 1
      %v750 = vmax.f32 %v748, %v749
      %v751 = vmax.f32 %v710, %v711
      %v752 = vrot.slane %v751, 4
      %v753 = vmax.f32 %v751, %v752
      %v754 = vrot.slane %v753, 2
      %v755 = vmax.f32 %v753, %v754
      %v756 = vrot.slane %v755, 1
      %v757 = vmax.f32 %v755, %v756
      %v758 = vmax.f32 %v712, %v713
      %v759 = vrot.slane %v758, 4
      %v760 = vmax.f32 %v758, %v759
      %v761 = vrot.slane %v760, 2
      %v762 = vmax.f32 %v760, %v761
      %v763 = vrot.slane %v762, 1
      %v764 = vmax.f32 %v762, %v763
      %v765 = vmax.f32 %v714, %v715
      %v766 = vrot.slane %v765, 4
      %v767 = vmax.f32 %v765, %v766
      %v768 = vrot.slane %v767, 2
      %v769 = vmax.f32 %v767, %v768
      %v770 = vrot.slane %v769, 1
      %v771 = vmax.f32 %v769, %v770
      %v772 = vmax.f32 %v550, %v722
      %v773 = vmax.f32 %v557, %v729
      %v774 = vmax.f32 %v564, %v736
      %v775 = vmax.f32 %v571, %v743
      %v776 = vmax.f32 %v578, %v750
      %v777 = vmax.f32 %v585, %v757
      %v778 = vmax.f32 %v592, %v764
      %v779 = vmax.f32 %v599, %v771
      %v780 = vld [vmem:[%s287 + $0x20] sm:$0xff]
      %v781 = vld [vmem:[%s287 + $0x28] sm:$0xff]
      %v782 = vld [vmem:[%s300 + $0x20] sm:$0xff]
      %v783 = vld [vmem:[%s300 + $0x28] sm:$0xff]
      %vm784 = vcmp.eq.s32.totalorder %v782, 0
      %vm785 = vcmp.eq.s32.totalorder %v783, 0
      %vm786 = vcmp.eq.s32.totalorder %v782, 1
      %vm787 = vcmp.eq.s32.totalorder %v783, 1
      %vm788 = vcmp.eq.s32.totalorder %v782, 2
      %vm789 = vcmp.eq.s32.totalorder %v783, 2
      %vm790 = vcmp.eq.s32.totalorder %v782, 3
      %vm791 = vcmp.eq.s32.totalorder %v783, 3
      %vm792 = vcmp.eq.s32.totalorder %v782, 4
      %vm793 = vcmp.eq.s32.totalorder %v783, 4
      %vm794 = vcmp.eq.s32.totalorder %v782, 5
      %vm795 = vcmp.eq.s32.totalorder %v783, 5
      %vm796 = vcmp.eq.s32.totalorder %v782, 6
      %vm797 = vcmp.eq.s32.totalorder %v783, 6
      %vm798 = vcmp.eq.s32.totalorder %v782, 7
      %vm799 = vcmp.eq.s32.totalorder %v783, 7
      %v800 = vsel %vm784, 1, 0
      %v801 = vsel %vm785, 1, 0
      %v802 = vsel %vm786, 1, 0
      %v803 = vsel %vm787, 1, 0
      %v804 = vsel %vm788, 1, 0
      %v805 = vsel %vm789, 1, 0
      %v806 = vsel %vm790, 1, 0
      %v807 = vsel %vm791, 1, 0
      %v808 = vsel %vm792, 1, 0
      %v809 = vsel %vm793, 1, 0
      %v810 = vsel %vm794, 1, 0
      %v811 = vsel %vm795, 1, 0
      %v812 = vsel %vm796, 1, 0
      %v813 = vsel %vm797, 1, 0
      %v814 = vsel %vm798, 1, 0
      %v815 = vsel %vm799, 1, 0
      %816 = vset.pattern.permute.xlu0 0
      %817 = vperm.xlu0 %816, %v800
      %v818 = vpop.permute.xlu0 %817
      %819 = vset.pattern.permute.xlu0 0
      %820 = vperm.xlu0 %819, %v801
      %v821 = vpop.permute.xlu0 %820
      %822 = vset.pattern.permute.xlu0 0
      %823 = vperm.xlu0 %822, %v802
      %v824 = vpop.permute.xlu0 %823
      %825 = vset.pattern.permute.xlu0 0
      %826 = vperm.xlu0 %825, %v803
      %v827 = vpop.permute.xlu0 %826
      %828 = vset.pattern.permute.xlu0 0
      %829 = vperm.xlu0 %828, %v804
      %v830 = vpop.permute.xlu0 %829
      %831 = vset.pattern.permute.xlu0 0
      %832 = vperm.xlu0 %831, %v805
      %v833 = vpop.permute.xlu0 %832
      %834 = vset.pattern.permute.xlu0 0
      %835 = vperm.xlu0 %834, %v806
      %v836 = vpop.permute.xlu0 %835
      %837 = vset.pattern.permute.xlu0 0
      %838 = vperm.xlu0 %837, %v807
      %v839 = vpop.permute.xlu0 %838
      %840 = vset.pattern.permute.xlu0 0
      %841 = vperm.xlu0 %840, %v808
      %v842 = vpop.permute.xlu0 %841
      %843 = vset.pattern.permute.xlu0 0
      %844 = vperm.xlu0 %843, %v809
      %v845 = vpop.permute.xlu0 %844
      %846 = vset.pattern.permute.xlu0 0
      %847 = vperm.xlu0 %846, %v810
      %v848 = vpop.permute.xlu0 %847
      %849 = vset.pattern.permute.xlu0 0
      %850 = vperm.xlu0 %849, %v811
      %v851 = vpop.permute.xlu0 %850
      %852 = vset.pattern.permute.xlu0 0
      %853 = vperm.xlu0 %852, %v812
      %v854 = vpop.permute.xlu0 %853
      %855 = vset.pattern.permute.xlu0 0
      %856 = vperm.xlu0 %855, %v813
      %v857 = vpop.permute.xlu0 %856
      %858 = vset.pattern.permute.xlu0 0
      %859 = vperm.xlu0 %858, %v814
      %v860 = vpop.permute.xlu0 %859
      %861 = vset.pattern.permute.xlu0 0
      %862 = vperm.xlu0 %861, %v815
      %v863 = vpop.permute.xlu0 %862
      %vm864 = vcmp.eq.s32.totalorder %v818, 1
      %vm865 = vcmp.eq.s32.totalorder %v821, 1
      %vm866 = vcmp.eq.s32.totalorder %v824, 1
      %vm867 = vcmp.eq.s32.totalorder %v827, 1
      %vm868 = vcmp.eq.s32.totalorder %v830, 1
      %vm869 = vcmp.eq.s32.totalorder %v833, 1
      %vm870 = vcmp.eq.s32.totalorder %v836, 1
      %vm871 = vcmp.eq.s32.totalorder %v839, 1
      %vm872 = vcmp.eq.s32.totalorder %v842, 1
      %vm873 = vcmp.eq.s32.totalorder %v845, 1
      %vm874 = vcmp.eq.s32.totalorder %v848, 1
      %vm875 = vcmp.eq.s32.totalorder %v851, 1
      %vm876 = vcmp.eq.s32.totalorder %v854, 1
      %vm877 = vcmp.eq.s32.totalorder %v857, 1
      %vm878 = vcmp.eq.s32.totalorder %v860, 1
      %vm879 = vcmp.eq.s32.totalorder %v863, 1
      %v880 = vsel %vm864, %v780, -inf
      %v881 = vsel %vm865, %v781, -inf
      %v882 = vsel %vm866, %v780, -inf
      %v883 = vsel %vm867, %v781, -inf
      %v884 = vsel %vm868, %v780, -inf
      %v885 = vsel %vm869, %v781, -inf
      %v886 = vsel %vm870, %v780, -inf
      %v887 = vsel %vm871, %v781, -inf
      %v888 = vsel %vm872, %v780, -inf
      %v889 = vsel %vm873, %v781, -inf
      %v890 = vsel %vm874, %v780, -inf
      %v891 = vsel %vm875, %v781, -inf
      %v892 = vsel %vm876, %v780, -inf
      %v893 = vsel %vm877, %v781, -inf
      %v894 = vsel %vm878, %v780, -inf
      %v895 = vsel %vm879, %v781, -inf
      %v896 = vmax.f32 %v880, %v881
      %v897 = vrot.slane %v896, 4
      %v898 = vmax.f32 %v896, %v897
      %v899 = vrot.slane %v898, 2
      %v900 = vmax.f32 %v898, %v899
      %v901 = vrot.slane %v900, 1
      %v902 = vmax.f32 %v900, %v901
      %v903 = vmax.f32 %v882, %v883
      %v904 = vrot.slane %v903, 4
      %v905 = vmax.f32 %v903, %v904
      %v906 = vrot.slane %v905, 2
      %v907 = vmax.f32 %v905, %v906
      %v908 = vrot.slane %v907, 1
      %v909 = vmax.f32 %v907, %v908
      %v910 = vmax.f32 %v884, %v885
      %v911 = vrot.slane %v910, 4
      %v912 = vmax.f32 %v910, %v911
      %v913 = vrot.slane %v912, 2
      %v914 = vmax.f32 %v912, %v913
      %v915 = vrot.slane %v914, 1
      %v916 = vmax.f32 %v914, %v915
      %v917 = vmax.f32 %v886, %v887
      %v918 = vrot.slane %v917, 4
      %v919 = vmax.f32 %v917, %v918
      %v920 = vrot.slane %v919, 2
      %v921 = vmax.f32 %v919, %v920
      %v922 = vrot.slane %v921, 1
      %v923 = vmax.f32 %v921, %v922
      %v924 = vmax.f32 %v888, %v889
      %v925 = vrot.slane %v924, 4
      %v926 = vmax.f32 %v924, %v925
      %v927 = vrot.slane %v926, 2
      %v928 = vmax.f32 %v926, %v927
      %v929 = vrot.slane %v928, 1
      %v930 = vmax.f32 %v928, %v929
      %v931 = vmax.f32 %v890, %v891
      %v932 = vrot.slane %v931, 4
      %v933 = vmax.f32 %v931, %v932
      %v934 = vrot.slane %v933, 2
      %v935 = vmax.f32 %v933, %v934
      %v936 = vrot.slane %v935, 1
      %v937 = vmax.f32 %v935, %v936
      %v938 = vmax.f32 %v892, %v893
      %v939 = vrot.slane %v938, 4
      %v940 = vmax.f32 %v938, %v939
      %v941 = vrot.slane %v940, 2
      %v942 = vmax.f32 %v940, %v941
      %v943 = vrot.slane %v942, 1
      %v944 = vmax.f32 %v942, %v943
      %v945 = vmax.f32 %v894, %v895
      %v946 = vrot.slane %v945, 4
      %v947 = vmax.f32 %v945, %v946
      %v948 = vrot.slane %v947, 2
      %v949 = vmax.f32 %v947, %v948
      %v950 = vrot.slane %v949, 1
      %v951 = vmax.f32 %v949, %v950
      %v952 = vmax.f32 %v772, %v902
      %v953 = vmax.f32 %v773, %v909
      %v954 = vmax.f32 %v774, %v916
      %v955 = vmax.f32 %v775, %v923
      %v956 = vmax.f32 %v776, %v930
      %v957 = vmax.f32 %v777, %v937
      %v958 = vmax.f32 %v778, %v944
      %v959 = vmax.f32 %v779, %v951
      %v960 = vld [vmem:[%s287 + $0x30] sm:$0xff]
      %v961 = vld [vmem:[%s287 + $0x38] sm:$0xff]
      %v962 = vld [vmem:[%s300 + $0x30] sm:$0xff]
      %v963 = vld [vmem:[%s300 + $0x38] sm:$0xff]
      %vm964 = vcmp.eq.s32.totalorder %v962, 0
      %vm965 = vcmp.eq.s32.totalorder %v963, 0
      %vm966 = vcmp.eq.s32.totalorder %v962, 1
      %vm967 = vcmp.eq.s32.totalorder %v963, 1
      %vm968 = vcmp.eq.s32.totalorder %v962, 2
      %vm969 = vcmp.eq.s32.totalorder %v963, 2
      %vm970 = vcmp.eq.s32.totalorder %v962, 3
      %vm971 = vcmp.eq.s32.totalorder %v963, 3
      %vm972 = vcmp.eq.s32.totalorder %v962, 4
      %vm973 = vcmp.eq.s32.totalorder %v963, 4
      %vm974 = vcmp.eq.s32.totalorder %v962, 5
      %vm975 = vcmp.eq.s32.totalorder %v963, 5
      %vm976 = vcmp.eq.s32.totalorder %v962, 6
      %vm977 = vcmp.eq.s32.totalorder %v963, 6
      %vm978 = vcmp.eq.s32.totalorder %v962, 7
      %vm979 = vcmp.eq.s32.totalorder %v963, 7
      %v980 = vsel %vm964, 1, 0
      %v981 = vsel %vm965, 1, 0
      %v982 = vsel %vm966, 1, 0
      %v983 = vsel %vm967, 1, 0
      %v984 = vsel %vm968, 1, 0
      %v985 = vsel %vm969, 1, 0
      %v986 = vsel %vm970, 1, 0
      %v987 = vsel %vm971, 1, 0
      %v988 = vsel %vm972, 1, 0
      %v989 = vsel %vm973, 1, 0
      %v990 = vsel %vm974, 1, 0
      %v991 = vsel %vm975, 1, 0
      %v992 = vsel %vm976, 1, 0
      %v993 = vsel %vm977, 1, 0
      %v994 = vsel %vm978, 1, 0
      %v995 = vsel %vm979, 1, 0
      %996 = vset.pattern.permute.xlu0 0
      %997 = vperm.xlu0 %996, %v980
      %v998 = vpop.permute.xlu0 %997
      %999 = vset.pattern.permute.xlu0 0
      %1000 = vperm.xlu0 %999, %v981
      %v1001 = vpop.permute.xlu0 %1000
      %1002 = vset.pattern.permute.xlu0 0
      %1003 = vperm.xlu0 %1002, %v982
      %v1004 = vpop.permute.xlu0 %1003
      %1005 = vset.pattern.permute.xlu0 0
      %1006 = vperm.xlu0 %1005, %v983
      %v1007 = vpop.permute.xlu0 %1006
      %1008 = vset.pattern.permute.xlu0 0
      %1009 = vperm.xlu0 %1008, %v984
      %v1010 = vpop.permute.xlu0 %1009
      %1011 = vset.pattern.permute.xlu0 0
      %1012 = vperm.xlu0 %1011, %v985
      %v1013 = vpop.permute.xlu0 %1012
      %1014 = vset.pattern.permute.xlu0 0
      %1015 = vperm.xlu0 %1014, %v986
      %v1016 = vpop.permute.xlu0 %1015
      %1017 = vset.pattern.permute.xlu0 0
      %1018 = vperm.xlu0 %1017, %v987
      %v1019 = vpop.permute.xlu0 %1018
      %1020 = vset.pattern.permute.xlu0 0
      %1021 = vperm.xlu0 %1020, %v988
      %v1022 = vpop.permute.xlu0 %1021
      %1023 = vset.pattern.permute.xlu0 0
      %1024 = vperm.xlu0 %1023, %v989
      %v1025 = vpop.permute.xlu0 %1024
      %1026 = vset.pattern.permute.xlu0 0
      %1027 = vperm.xlu0 %1026, %v990
      %v1028 = vpop.permute.xlu0 %1027
      %1029 = vset.pattern.permute.xlu0 0
      %1030 = vperm.xlu0 %1029, %v991
      %v1031 = vpop.permute.xlu0 %1030
      %1032 = vset.pattern.permute.xlu0 0
      %1033 = vperm.xlu0 %1032, %v992
      %v1034 = vpop.permute.xlu0 %1033
      %1035 = vset.pattern.permute.xlu0 0
      %1036 = vperm.xlu0 %1035, %v993
      %v1037 = vpop.permute.xlu0 %1036
      %1038 = vset.pattern.permute.xlu0 0
      %1039 = vperm.xlu0 %1038, %v994
      %v1040 = vpop.permute.xlu0 %1039
      %1041 = vset.pattern.permute.xlu0 0
      %1042 = vperm.xlu0 %1041, %v995
      %v1043 = vpop.permute.xlu0 %1042
      %vm1044 = vcmp.eq.s32.totalorder %v998, 1
      %vm1045 = vcmp.eq.s32.totalorder %v1001, 1
      %vm1046 = vcmp.eq.s32.totalorder %v1004, 1
      %vm1047 = vcmp.eq.s32.totalorder %v1007, 1
      %vm1048 = vcmp.eq.s32.totalorder %v1010, 1
      %vm1049 = vcmp.eq.s32.totalorder %v1013, 1
      %vm1050 = vcmp.eq.s32.totalorder %v1016, 1
      %vm1051 = vcmp.eq.s32.totalorder %v1019, 1
      %vm1052 = vcmp.eq.s32.totalorder %v1022, 1
      %vm1053 = vcmp.eq.s32.totalorder %v1025, 1
      %vm1054 = vcmp.eq.s32.totalorder %v1028, 1
      %vm1055 = vcmp.eq.s32.totalorder %v1031, 1
      %vm1056 = vcmp.eq.s32.totalorder %v1034, 1
      %vm1057 = vcmp.eq.s32.totalorder %v1037, 1
      %vm1058 = vcmp.eq.s32.totalorder %v1040, 1
      %vm1059 = vcmp.eq.s32.totalorder %v1043, 1
      %v1060 = vsel %vm1044, %v960, -inf
      %v1061 = vsel %vm1045, %v961, -inf
      %v1062 = vsel %vm1046, %v960, -inf
      %v1063 = vsel %vm1047, %v961, -inf
      %v1064 = vsel %vm1048, %v960, -inf
      %v1065 = vsel %vm1049, %v961, -inf
      %v1066 = vsel %vm1050, %v960, -inf
      %v1067 = vsel %vm1051, %v961, -inf
      %v1068 = vsel %vm1052, %v960, -inf
      %v1069 = vsel %vm1053, %v961, -inf
      %v1070 = vsel %vm1054, %v960, -inf
      %v1071 = vsel %vm1055, %v961, -inf
      %v1072 = vsel %vm1056, %v960, -inf
      %v1073 = vsel %vm1057, %v961, -inf
      %v1074 = vsel %vm1058, %v960, -inf
      %v1075 = vsel %vm1059, %v961, -inf
      %v1076 = vmax.f32 %v1060, %v1061
      %v1077 = vrot.slane %v1076, 4
      %v1078 = vmax.f32 %v1076, %v1077
      %v1079 = vrot.slane %v1078, 2
      %v1080 = vmax.f32 %v1078, %v1079
      %v1081 = vrot.slane %v1080, 1
      %v1082 = vmax.f32 %v1080, %v1081
      %v1083 = vmax.f32 %v1062, %v1063
      %v1084 = vrot.slane %v1083, 4
      %v1085 = vmax.f32 %v1083, %v1084
      %v1086 = vrot.slane %v1085, 2
      %v1087 = vmax.f32 %v1085, %v1086
      %v1088 = vrot.slane %v1087, 1
      %v1089 = vmax.f32 %v1087, %v1088
      %v1090 = vmax.f32 %v1064, %v1065
      %v1091 = vrot.slane %v1090, 4
      %v1092 = vmax.f32 %v1090, %v1091
      %v1093 = vrot.slane %v1092, 2
      %v1094 = vmax.f32 %v1092, %v1093
      %v1095 = vrot.slane %v1094, 1
      %v1096 = vmax.f32 %v1094, %v1095
      %v1097 = vmax.f32 %v1066, %v1067
      %v1098 = vrot.slane %v1097, 4
      %v1099 = vmax.f32 %v1097, %v1098
      %v1100 = vrot.slane %v1099, 2
      %v1101 = vmax.f32 %v1099, %v1100
      %v1102 = vrot.slane %v1101, 1
      %v1103 = vmax.f32 %v1101, %v1102
      %v1104 = vmax.f32 %v1068, %v1069
      %v1105 = vrot.slane %v1104, 4
      %v1106 = vmax.f32 %v1104, %v1105
      %v1107 = vrot.slane %v1106, 2
      %v1108 = vmax.f32 %v1106, %v1107
      %v1109 = vrot.slane %v1108, 1
      %v1110 = vmax.f32 %v1108, %v1109
      %v1111 = vmax.f32 %v1070, %v1071
      %v1112 = vrot.slane %v1111, 4
      %v1113 = vmax.f32 %v1111, %v1112
      %v1114 = vrot.slane %v1113, 2
      %v1115 = vmax.f32 %v1113, %v1114
      %v1116 = vrot.slane %v1115, 1
      %v1117 = vmax.f32 %v1115, %v1116
      %v1118 = vmax.f32 %v1072, %v1073
      %v1119 = vrot.slane %v1118, 4
      %v1120 = vmax.f32 %v1118, %v1119
      %v1121 = vrot.slane %v1120, 2
      %v1122 = vmax.f32 %v1120, %v1121
      %v1123 = vrot.slane %v1122, 1
      %v1124 = vmax.f32 %v1122, %v1123
      %v1125 = vmax.f32 %v1074, %v1075
      %v1126 = vrot.slane %v1125, 4
      %v1127 = vmax.f32 %v1125, %v1126
      %v1128 = vrot.slane %v1127, 2
      %v1129 = vmax.f32 %v1127, %v1128
      %v1130 = vrot.slane %v1129, 1
      %v1131 = vmax.f32 %v1129, %v1130
      %v1132 = vmax.f32 %v952, %v1082
      %v1133 = vmax.f32 %v953, %v1089
      %v1134 = vmax.f32 %v954, %v1096
      %v1135 = vmax.f32 %v955, %v1103
      %v1136 = vmax.f32 %v956, %v1110
      %v1137 = vmax.f32 %v957, %v1117
      %v1138 = vmax.f32 %v958, %v1124
      %v1139 = vmax.f32 %v959, %v1131
      %v1140 = vld [vmem:[%s287 + $0x40] sm:$0xff]
      %v1141 = vld [vmem:[%s287 + $0x48] sm:$0xff]
      %v1142 = vld [vmem:[%s300 + $0x40] sm:$0xff]
      %v1143 = vld [vmem:[%s300 + $0x48] sm:$0xff]
      %vm1144 = vcmp.eq.s32.totalorder %v1142, 0
      %vm1145 = vcmp.eq.s32.totalorder %v1143, 0
      %vm1146 = vcmp.eq.s32.totalorder %v1142, 1
      %vm1147 = vcmp.eq.s32.totalorder %v1143, 1
      %vm1148 = vcmp.eq.s32.totalorder %v1142, 2
      %vm1149 = vcmp.eq.s32.totalorder %v1143, 2
      %vm1150 = vcmp.eq.s32.totalorder %v1142, 3
      %vm1151 = vcmp.eq.s32.totalorder %v1143, 3
      %vm1152 = vcmp.eq.s32.totalorder %v1142, 4
      %vm1153 = vcmp.eq.s32.totalorder %v1143, 4
      %vm1154 = vcmp.eq.s32.totalorder %v1142, 5
      %vm1155 = vcmp.eq.s32.totalorder %v1143, 5
      %vm1156 = vcmp.eq.s32.totalorder %v1142, 6
      %vm1157 = vcmp.eq.s32.totalorder %v1143, 6
      %vm1158 = vcmp.eq.s32.totalorder %v1142, 7
      %vm1159 = vcmp.eq.s32.totalorder %v1143, 7
      %v1160 = vsel %vm1144, 1, 0
      %v1161 = vsel %vm1145, 1, 0
      %v1162 = vsel %vm1146, 1, 0
      %v1163 = vsel %vm1147, 1, 0
      %v1164 = vsel %vm1148, 1, 0
      %v1165 = vsel %vm1149, 1, 0
      %v1166 = vsel %vm1150, 1, 0
      %v1167 = vsel %vm1151, 1, 0
      %v1168 = vsel %vm1152, 1, 0
      %v1169 = vsel %vm1153, 1, 0
      %v1170 = vsel %vm1154, 1, 0
      %v1171 = vsel %vm1155, 1, 0
      %v1172 = vsel %vm1156, 1, 0
      %v1173 = vsel %vm1157, 1, 0
      %v1174 = vsel %vm1158, 1, 0
      %v1175 = vsel %vm1159, 1, 0
      %1176 = vset.pattern.permute.xlu0 0
      %1177 = vperm.xlu0 %1176, %v1160
      %v1178 = vpop.permute.xlu0 %1177
      %1179 = vset.pattern.permute.xlu0 0
      %1180 = vperm.xlu0 %1179, %v1161
      %v1181 = vpop.permute.xlu0 %1180
      %1182 = vset.pattern.permute.xlu0 0
      %1183 = vperm.xlu0 %1182, %v1162
      %v1184 = vpop.permute.xlu0 %1183
      %1185 = vset.pattern.permute.xlu0 0
      %1186 = vperm.xlu0 %1185, %v1163
      %v1187 = vpop.permute.xlu0 %1186
      %1188 = vset.pattern.permute.xlu0 0
      %1189 = vperm.xlu0 %1188, %v1164
      %v1190 = vpop.permute.xlu0 %1189
      %1191 = vset.pattern.permute.xlu0 0
      %1192 = vperm.xlu0 %1191, %v1165
      %v1193 = vpop.permute.xlu0 %1192
      %1194 = vset.pattern.permute.xlu0 0
      %1195 = vperm.xlu0 %1194, %v1166
      %v1196 = vpop.permute.xlu0 %1195
      %1197 = vset.pattern.permute.xlu0 0
      %1198 = vperm.xlu0 %1197, %v1167
      %v1199 = vpop.permute.xlu0 %1198
      %1200 = vset.pattern.permute.xlu0 0
      %1201 = vperm.xlu0 %1200, %v1168
      %v1202 = vpop.permute.xlu0 %1201
      %1203 = vset.pattern.permute.xlu0 0
      %1204 = vperm.xlu0 %1203, %v1169
      %v1205 = vpop.permute.xlu0 %1204
      %1206 = vset.pattern.permute.xlu0 0
      %1207 = vperm.xlu0 %1206, %v1170
      %v1208 = vpop.permute.xlu0 %1207
      %1209 = vset.pattern.permute.xlu0 0
      %1210 = vperm.xlu0 %1209, %v1171
      %v1211 = vpop.permute.xlu0 %1210
      %1212 = vset.pattern.permute.xlu0 0
      %1213 = vperm.xlu0 %1212, %v1172
      %v1214 = vpop.permute.xlu0 %1213
      %1215 = vset.pattern.permute.xlu0 0
      %1216 = vperm.xlu0 %1215, %v1173
      %v1217 = vpop.permute.xlu0 %1216
      %1218 = vset.pattern.permute.xlu0 0
      %1219 = vperm.xlu0 %1218, %v1174
      %v1220 = vpop.permute.xlu0 %1219
      %1221 = vset.pattern.permute.xlu0 0
      %1222 = vperm.xlu0 %1221, %v1175
      %v1223 = vpop.permute.xlu0 %1222
      %vm1224 = vcmp.eq.s32.totalorder %v1178, 1
      %vm1225 = vcmp.eq.s32.totalorder %v1181, 1
      %vm1226 = vcmp.eq.s32.totalorder %v1184, 1
      %vm1227 = vcmp.eq.s32.totalorder %v1187, 1
      %vm1228 = vcmp.eq.s32.totalorder %v1190, 1
      %vm1229 = vcmp.eq.s32.totalorder %v1193, 1
      %vm1230 = vcmp.eq.s32.totalorder %v1196, 1
      %vm1231 = vcmp.eq.s32.totalorder %v1199, 1
      %vm1232 = vcmp.eq.s32.totalorder %v1202, 1
      %vm1233 = vcmp.eq.s32.totalorder %v1205, 1
      %vm1234 = vcmp.eq.s32.totalorder %v1208, 1
      %vm1235 = vcmp.eq.s32.totalorder %v1211, 1
      %vm1236 = vcmp.eq.s32.totalorder %v1214, 1
      %vm1237 = vcmp.eq.s32.totalorder %v1217, 1
      %vm1238 = vcmp.eq.s32.totalorder %v1220, 1
      %vm1239 = vcmp.eq.s32.totalorder %v1223, 1
      %v1240 = vsel %vm1224, %v1140, -inf
      %v1241 = vsel %vm1225, %v1141, -inf
      %v1242 = vsel %vm1226, %v1140, -inf
      %v1243 = vsel %vm1227, %v1141, -inf
      %v1244 = vsel %vm1228, %v1140, -inf
      %v1245 = vsel %vm1229, %v1141, -inf
      %v1246 = vsel %vm1230, %v1140, -inf
      %v1247 = vsel %vm1231, %v1141, -inf
      %v1248 = vsel %vm1232, %v1140, -inf
      %v1249 = vsel %vm1233, %v1141, -inf
      %v1250 = vsel %vm1234, %v1140, -inf
      %v1251 = vsel %vm1235, %v1141, -inf
      %v1252 = vsel %vm1236, %v1140, -inf
      %v1253 = vsel %vm1237, %v1141, -inf
      %v1254 = vsel %vm1238, %v1140, -inf
      %v1255 = vsel %vm1239, %v1141, -inf
      %v1256 = vmax.f32 %v1240, %v1241
      %v1257 = vrot.slane %v1256, 4
      %v1258 = vmax.f32 %v1256, %v1257
      %v1259 = vrot.slane %v1258, 2
      %v1260 = vmax.f32 %v1258, %v1259
      %v1261 = vrot.slane %v1260, 1
      %v1262 = vmax.f32 %v1260, %v1261
      %v1263 = vmax.f32 %v1242, %v1243
      %v1264 = vrot.slane %v1263, 4
      %v1265 = vmax.f32 %v1263, %v1264
      %v1266 = vrot.slane %v1265, 2
      %v1267 = vmax.f32 %v1265, %v1266
      %v1268 = vrot.slane %v1267, 1
      %v1269 = vmax.f32 %v1267, %v1268
      %v1270 = vmax.f32 %v1244, %v1245
      %v1271 = vrot.slane %v1270, 4
      %v1272 = vmax.f32 %v1270, %v1271
      %v1273 = vrot.slane %v1272, 2
      %v1274 = vmax.f32 %v1272, %v1273
      %v1275 = vrot.slane %v1274, 1
      %v1276 = vmax.f32 %v1274, %v1275
      %v1277 = vmax.f32 %v1246, %v1247
      %v1278 = vrot.slane %v1277, 4
      %v1279 = vmax.f32 %v1277, %v1278
      %v1280 = vrot.slane %v1279, 2
      %v1281 = vmax.f32 %v1279, %v1280
      %v1282 = vrot.slane %v1281, 1
      %v1283 = vmax.f32 %v1281, %v1282
      %v1284 = vmax.f32 %v1248, %v1249
      %v1285 = vrot.slane %v1284, 4
      %v1286 = vmax.f32 %v1284, %v1285
      %v1287 = vrot.slane %v1286, 2
      %v1288 = vmax.f32 %v1286, %v1287
      %v1289 = vrot.slane %v1288, 1
      %v1290 = vmax.f32 %v1288, %v1289
      %v1291 = vmax.f32 %v1250, %v1251
      %v1292 = vrot.slane %v1291, 4
      %v1293 = vmax.f32 %v1291, %v1292
      %v1294 = vrot.slane %v1293, 2
      %v1295 = vmax.f32 %v1293, %v1294
      %v1296 = vrot.slane %v1295, 1
      %v1297 = vmax.f32 %v1295, %v1296
      %v1298 = vmax.f32 %v1252, %v1253
      %v1299 = vrot.slane %v1298, 4
      %v1300 = vmax.f32 %v1298, %v1299
      %v1301 = vrot.slane %v1300, 2
      %v1302 = vmax.f32 %v1300, %v1301
      %v1303 = vrot.slane %v1302, 1
      %v1304 = vmax.f32 %v1302, %v1303
      %v1305 = vmax.f32 %v1254, %v1255
      %v1306 = vrot.slane %v1305, 4
      %v1307 = vmax.f32 %v1305, %v1306
      %v1308 = vrot.slane %v1307, 2
      %v1309 = vmax.f32 %v1307, %v1308
      %v1310 = vrot.slane %v1309, 1
      %v1311 = vmax.f32 %v1309, %v1310
      %v1312 = vmax.f32 %v1132, %v1262
      %v1313 = vmax.f32 %v1133, %v1269
      %v1314 = vmax.f32 %v1134, %v1276
      %v1315 = vmax.f32 %v1135, %v1283
      %v1316 = vmax.f32 %v1136, %v1290
      %v1317 = vmax.f32 %v1137, %v1297
      %v1318 = vmax.f32 %v1138, %v1304
      %v1319 = vmax.f32 %v1139, %v1311
      %v1320 = vld [vmem:[%s287 + $0x50] sm:$0xff]
      %v1321 = vld [vmem:[%s287 + $0x58] sm:$0xff]
      %v1322 = vld [vmem:[%s300 + $0x50] sm:$0xff]
      %v1323 = vld [vmem:[%s300 + $0x58] sm:$0xff]
      %vm1324 = vcmp.eq.s32.totalorder %v1322, 0
      %vm1325 = vcmp.eq.s32.totalorder %v1323, 0
      %vm1326 = vcmp.eq.s32.totalorder %v1322, 1
      %vm1327 = vcmp.eq.s32.totalorder %v1323, 1
      %vm1328 = vcmp.eq.s32.totalorder %v1322, 2
      %vm1329 = vcmp.eq.s32.totalorder %v1323, 2
      %vm1330 = vcmp.eq.s32.totalorder %v1322, 3
      %vm1331 = vcmp.eq.s32.totalorder %v1323, 3
      %vm1332 = vcmp.eq.s32.totalorder %v1322, 4
      %vm1333 = vcmp.eq.s32.totalorder %v1323, 4
      %vm1334 = vcmp.eq.s32.totalorder %v1322, 5
      %vm1335 = vcmp.eq.s32.totalorder %v1323, 5
      %vm1336 = vcmp.eq.s32.totalorder %v1322, 6
      %vm1337 = vcmp.eq.s32.totalorder %v1323, 6
      %vm1338 = vcmp.eq.s32.totalorder %v1322, 7
      %vm1339 = vcmp.eq.s32.totalorder %v1323, 7
      %v1340 = vsel %vm1324, 1, 0
      %v1341 = vsel %vm1325, 1, 0
      %v1342 = vsel %vm1326, 1, 0
      %v1343 = vsel %vm1327, 1, 0
      %v1344 = vsel %vm1328, 1, 0
      %v1345 = vsel %vm1329, 1, 0
      %v1346 = vsel %vm1330, 1, 0
      %v1347 = vsel %vm1331, 1, 0
      %v1348 = vsel %vm1332, 1, 0
      %v1349 = vsel %vm1333, 1, 0
      %v1350 = vsel %vm1334, 1, 0
      %v1351 = vsel %vm1335, 1, 0
      %v1352 = vsel %vm1336, 1, 0
      %v1353 = vsel %vm1337, 1, 0
      %v1354 = vsel %vm1338, 1, 0
      %v1355 = vsel %vm1339, 1, 0
      %1356 = vset.pattern.permute.xlu0 0
      %1357 = vperm.xlu0 %1356, %v1340
      %v1358 = vpop.permute.xlu0 %1357
      %1359 = vset.pattern.permute.xlu0 0
      %1360 = vperm.xlu0 %1359, %v1341
      %v1361 = vpop.permute.xlu0 %1360
      %1362 = vset.pattern.permute.xlu0 0
      %1363 = vperm.xlu0 %1362, %v1342
      %v1364 = vpop.permute.xlu0 %1363
      %1365 = vset.pattern.permute.xlu0 0
      %1366 = vperm.xlu0 %1365, %v1343
      %v1367 = vpop.permute.xlu0 %1366
      %1368 = vset.pattern.permute.xlu0 0
      %1369 = vperm.xlu0 %1368, %v1344
      %v1370 = vpop.permute.xlu0 %1369
      %1371 = vset.pattern.permute.xlu0 0
      %1372 = vperm.xlu0 %1371, %v1345
      %v1373 = vpop.permute.xlu0 %1372
      %1374 = vset.pattern.permute.xlu0 0
      %1375 = vperm.xlu0 %1374, %v1346
      %v1376 = vpop.permute.xlu0 %1375
      %1377 = vset.pattern.permute.xlu0 0
      %1378 = vperm.xlu0 %1377, %v1347
      %v1379 = vpop.permute.xlu0 %1378
      %1380 = vset.pattern.permute.xlu0 0
      %1381 = vperm.xlu0 %1380, %v1348
      %v1382 = vpop.permute.xlu0 %1381
      %1383 = vset.pattern.permute.xlu0 0
      %1384 = vperm.xlu0 %1383, %v1349
      %v1385 = vpop.permute.xlu0 %1384
      %1386 = vset.pattern.permute.xlu0 0
      %1387 = vperm.xlu0 %1386, %v1350
      %v1388 = vpop.permute.xlu0 %1387
      %1389 = vset.pattern.permute.xlu0 0
      %1390 = vperm.xlu0 %1389, %v1351
      %v1391 = vpop.permute.xlu0 %1390
      %1392 = vset.pattern.permute.xlu0 0
      %1393 = vperm.xlu0 %1392, %v1352
      %v1394 = vpop.permute.xlu0 %1393
      %1395 = vset.pattern.permute.xlu0 0
      %1396 = vperm.xlu0 %1395, %v1353
      %v1397 = vpop.permute.xlu0 %1396
      %1398 = vset.pattern.permute.xlu0 0
      %1399 = vperm.xlu0 %1398, %v1354
      %v1400 = vpop.permute.xlu0 %1399
      %1401 = vset.pattern.permute.xlu0 0
      %1402 = vperm.xlu0 %1401, %v1355
      %v1403 = vpop.permute.xlu0 %1402
      %vm1404 = vcmp.eq.s32.totalorder %v1358, 1
      %vm1405 = vcmp.eq.s32.totalorder %v1361, 1
      %vm1406 = vcmp.eq.s32.totalorder %v1364, 1
      %vm1407 = vcmp.eq.s32.totalorder %v1367, 1
      %vm1408 = vcmp.eq.s32.totalorder %v1370, 1
      %vm1409 = vcmp.eq.s32.totalorder %v1373, 1
      %vm1410 = vcmp.eq.s32.totalorder %v1376, 1
      %vm1411 = vcmp.eq.s32.totalorder %v1379, 1
      %vm1412 = vcmp.eq.s32.totalorder %v1382, 1
      %vm1413 = vcmp.eq.s32.totalorder %v1385, 1
      %vm1414 = vcmp.eq.s32.totalorder %v1388, 1
      %vm1415 = vcmp.eq.s32.totalorder %v1391, 1
      %vm1416 = vcmp.eq.s32.totalorder %v1394, 1
      %vm1417 = vcmp.eq.s32.totalorder %v1397, 1
      %vm1418 = vcmp.eq.s32.totalorder %v1400, 1
      %vm1419 = vcmp.eq.s32.totalorder %v1403, 1
      %v1420 = vsel %vm1404, %v1320, -inf
      %v1421 = vsel %vm1405, %v1321, -inf
      %v1422 = vsel %vm1406, %v1320, -inf
      %v1423 = vsel %vm1407, %v1321, -inf
      %v1424 = vsel %vm1408, %v1320, -inf
      %v1425 = vsel %vm1409, %v1321, -inf
      %v1426 = vsel %vm1410, %v1320, -inf
      %v1427 = vsel %vm1411, %v1321, -inf
      %v1428 = vsel %vm1412, %v1320, -inf
      %v1429 = vsel %vm1413, %v1321, -inf
      %v1430 = vsel %vm1414, %v1320, -inf
      %v1431 = vsel %vm1415, %v1321, -inf
      %v1432 = vsel %vm1416, %v1320, -inf
      %v1433 = vsel %vm1417, %v1321, -inf
      %v1434 = vsel %vm1418, %v1320, -inf
      %v1435 = vsel %vm1419, %v1321, -inf
      %v1436 = vmax.f32 %v1420, %v1421
      %v1437 = vrot.slane %v1436, 4
      %v1438 = vmax.f32 %v1436, %v1437
      %v1439 = vrot.slane %v1438, 2
      %v1440 = vmax.f32 %v1438, %v1439
      %v1441 = vrot.slane %v1440, 1
      %v1442 = vmax.f32 %v1440, %v1441
      %v1443 = vmax.f32 %v1422, %v1423
      %v1444 = vrot.slane %v1443, 4
      %v1445 = vmax.f32 %v1443, %v1444
      %v1446 = vrot.slane %v1445, 2
      %v1447 = vmax.f32 %v1445, %v1446
      %v1448 = vrot.slane %v1447, 1
      %v1449 = vmax.f32 %v1447, %v1448
      %v1450 = vmax.f32 %v1424, %v1425
      %v1451 = vrot.slane %v1450, 4
      %v1452 = vmax.f32 %v1450, %v1451
      %v1453 = vrot.slane %v1452, 2
      %v1454 = vmax.f32 %v1452, %v1453
      %v1455 = vrot.slane %v1454, 1
      %v1456 = vmax.f32 %v1454, %v1455
      %v1457 = vmax.f32 %v1426, %v1427
      %v1458 = vrot.slane %v1457, 4
      %v1459 = vmax.f32 %v1457, %v1458
      %v1460 = vrot.slane %v1459, 2
      %v1461 = vmax.f32 %v1459, %v1460
      %v1462 = vrot.slane %v1461, 1
      %v1463 = vmax.f32 %v1461, %v1462
      %v1464 = vmax.f32 %v1428, %v1429
      %v1465 = vrot.slane %v1464, 4
      %v1466 = vmax.f32 %v1464, %v1465
      %v1467 = vrot.slane %v1466, 2
      %v1468 = vmax.f32 %v1466, %v1467
      %v1469 = vrot.slane %v1468, 1
      %v1470 = vmax.f32 %v1468, %v1469
      %v1471 = vmax.f32 %v1430, %v1431
      %v1472 = vrot.slane %v1471, 4
      %v1473 = vmax.f32 %v1471, %v1472
      %v1474 = vrot.slane %v1473, 2
      %v1475 = vmax.f32 %v1473, %v1474
      %v1476 = vrot.slane %v1475, 1
      %v1477 = vmax.f32 %v1475, %v1476
      %v1478 = vmax.f32 %v1432, %v1433
      %v1479 = vrot.slane %v1478, 4
      %v1480 = vmax.f32 %v1478, %v1479
      %v1481 = vrot.slane %v1480, 2
      %v1482 = vmax.f32 %v1480, %v1481
      %v1483 = vrot.slane %v1482, 1
      %v1484 = vmax.f32 %v1482, %v1483
      %v1485 = vmax.f32 %v1434, %v1435
      %v1486 = vrot.slane %v1485, 4
      %v1487 = vmax.f32 %v1485, %v1486
      %v1488 = vrot.slane %v1487, 2
      %v1489 = vmax.f32 %v1487, %v1488
      %v1490 = vrot.slane %v1489, 1
      %v1491 = vmax.f32 %v1489, %v1490
      %v1492 = vmax.f32 %v1312, %v1442
      %v1493 = vmax.f32 %v1313, %v1449
      %v1494 = vmax.f32 %v1314, %v1456
      %v1495 = vmax.f32 %v1315, %v1463
      %v1496 = vmax.f32 %v1316, %v1470
      %v1497 = vmax.f32 %v1317, %v1477
      %v1498 = vmax.f32 %v1318, %v1484
      %v1499 = vmax.f32 %v1319, %v1491
      %v1500 = vld [vmem:[%s287 + $0x60] sm:$0xff]
      %v1501 = vld [vmem:[%s287 + $0x68] sm:$0xff]
      %v1502 = vld [vmem:[%s300 + $0x60] sm:$0xff]
      %v1503 = vld [vmem:[%s300 + $0x68] sm:$0xff]
      %vm1504 = vcmp.eq.s32.totalorder %v1502, 0
      %vm1505 = vcmp.eq.s32.totalorder %v1503, 0
      %vm1506 = vcmp.eq.s32.totalorder %v1502, 1
      %vm1507 = vcmp.eq.s32.totalorder %v1503, 1
      %vm1508 = vcmp.eq.s32.totalorder %v1502, 2
      %vm1509 = vcmp.eq.s32.totalorder %v1503, 2
      %vm1510 = vcmp.eq.s32.totalorder %v1502, 3
      %vm1511 = vcmp.eq.s32.totalorder %v1503, 3
      %vm1512 = vcmp.eq.s32.totalorder %v1502, 4
      %vm1513 = vcmp.eq.s32.totalorder %v1503, 4
      %vm1514 = vcmp.eq.s32.totalorder %v1502, 5
      %vm1515 = vcmp.eq.s32.totalorder %v1503, 5
      %vm1516 = vcmp.eq.s32.totalorder %v1502, 6
      %vm1517 = vcmp.eq.s32.totalorder %v1503, 6
      %vm1518 = vcmp.eq.s32.totalorder %v1502, 7
      %vm1519 = vcmp.eq.s32.totalorder %v1503, 7
      %v1520 = vsel %vm1504, 1, 0
      %v1521 = vsel %vm1505, 1, 0
      %v1522 = vsel %vm1506, 1, 0
      %v1523 = vsel %vm1507, 1, 0
      %v1524 = vsel %vm1508, 1, 0
      %v1525 = vsel %vm1509, 1, 0
      %v1526 = vsel %vm1510, 1, 0
      %v1527 = vsel %vm1511, 1, 0
      %v1528 = vsel %vm1512, 1, 0
      %v1529 = vsel %vm1513, 1, 0
      %v1530 = vsel %vm1514, 1, 0
      %v1531 = vsel %vm1515, 1, 0
      %v1532 = vsel %vm1516, 1, 0
      %v1533 = vsel %vm1517, 1, 0
      %v1534 = vsel %vm1518, 1, 0
      %v1535 = vsel %vm1519, 1, 0
      %1536 = vset.pattern.permute.xlu0 0
      %1537 = vperm.xlu0 %1536, %v1520
      %v1538 = vpop.permute.xlu0 %1537
      %1539 = vset.pattern.permute.xlu0 0
      %1540 = vperm.xlu0 %1539, %v1521
      %v1541 = vpop.permute.xlu0 %1540
      %1542 = vset.pattern.permute.xlu0 0
      %1543 = vperm.xlu0 %1542, %v1522
      %v1544 = vpop.permute.xlu0 %1543
      %1545 = vset.pattern.permute.xlu0 0
      %1546 = vperm.xlu0 %1545, %v1523
      %v1547 = vpop.permute.xlu0 %1546
      %1548 = vset.pattern.permute.xlu0 0
      %1549 = vperm.xlu0 %1548, %v1524
      %v1550 = vpop.permute.xlu0 %1549
      %1551 = vset.pattern.permute.xlu0 0
      %1552 = vperm.xlu0 %1551, %v1525
      %v1553 = vpop.permute.xlu0 %1552
      %1554 = vset.pattern.permute.xlu0 0
      %1555 = vperm.xlu0 %1554, %v1526
      %v1556 = vpop.permute.xlu0 %1555
      %1557 = vset.pattern.permute.xlu0 0
      %1558 = vperm.xlu0 %1557, %v1527
      %v1559 = vpop.permute.xlu0 %1558
      %1560 = vset.pattern.permute.xlu0 0
      %1561 = vperm.xlu0 %1560, %v1528
      %v1562 = vpop.permute.xlu0 %1561
      %1563 = vset.pattern.permute.xlu0 0
      %1564 = vperm.xlu0 %1563, %v1529
      %v1565 = vpop.permute.xlu0 %1564
      %1566 = vset.pattern.permute.xlu0 0
      %1567 = vperm.xlu0 %1566, %v1530
      %v1568 = vpop.permute.xlu0 %1567
      %1569 = vset.pattern.permute.xlu0 0
      %1570 = vperm.xlu0 %1569, %v1531
      %v1571 = vpop.permute.xlu0 %1570
      %1572 = vset.pattern.permute.xlu0 0
      %1573 = vperm.xlu0 %1572, %v1532
      %v1574 = vpop.permute.xlu0 %1573
      %1575 = vset.pattern.permute.xlu0 0
      %1576 = vperm.xlu0 %1575, %v1533
      %v1577 = vpop.permute.xlu0 %1576
      %1578 = vset.pattern.permute.xlu0 0
      %1579 = vperm.xlu0 %1578, %v1534
      %v1580 = vpop.permute.xlu0 %1579
      %1581 = vset.pattern.permute.xlu0 0
      %1582 = vperm.xlu0 %1581, %v1535
      %v1583 = vpop.permute.xlu0 %1582
      %vm1584 = vcmp.eq.s32.totalorder %v1538, 1
      %vm1585 = vcmp.eq.s32.totalorder %v1541, 1
      %vm1586 = vcmp.eq.s32.totalorder %v1544, 1
      %vm1587 = vcmp.eq.s32.totalorder %v1547, 1
      %vm1588 = vcmp.eq.s32.totalorder %v1550, 1
      %vm1589 = vcmp.eq.s32.totalorder %v1553, 1
      %vm1590 = vcmp.eq.s32.totalorder %v1556, 1
      %vm1591 = vcmp.eq.s32.totalorder %v1559, 1
      %vm1592 = vcmp.eq.s32.totalorder %v1562, 1
      %vm1593 = vcmp.eq.s32.totalorder %v1565, 1
      %vm1594 = vcmp.eq.s32.totalorder %v1568, 1
      %vm1595 = vcmp.eq.s32.totalorder %v1571, 1
      %vm1596 = vcmp.eq.s32.totalorder %v1574, 1
      %vm1597 = vcmp.eq.s32.totalorder %v1577, 1
      %vm1598 = vcmp.eq.s32.totalorder %v1580, 1
      %vm1599 = vcmp.eq.s32.totalorder %v1583, 1
      %v1600 = vsel %vm1584, %v1500, -inf
      %v1601 = vsel %vm1585, %v1501, -inf
      %v1602 = vsel %vm1586, %v1500, -inf
      %v1603 = vsel %vm1587, %v1501, -inf
      %v1604 = vsel %vm1588, %v1500, -inf
      %v1605 = vsel %vm1589, %v1501, -inf
      %v1606 = vsel %vm1590, %v1500, -inf
      %v1607 = vsel %vm1591, %v1501, -inf
      %v1608 = vsel %vm1592, %v1500, -inf
      %v1609 = vsel %vm1593, %v1501, -inf
      %v1610 = vsel %vm1594, %v1500, -inf
      %v1611 = vsel %vm1595, %v1501, -inf
      %v1612 = vsel %vm1596, %v1500, -inf
      %v1613 = vsel %vm1597, %v1501, -inf
      %v1614 = vsel %vm1598, %v1500, -inf
      %v1615 = vsel %vm1599, %v1501, -inf
      %v1616 = vmax.f32 %v1600, %v1601
      %v1617 = vrot.slane %v1616, 4
      %v1618 = vmax.f32 %v1616, %v1617
      %v1619 = vrot.slane %v1618, 2
      %v1620 = vmax.f32 %v1618, %v1619
      %v1621 = vrot.slane %v1620, 1
      %v1622 = vmax.f32 %v1620, %v1621
      %v1623 = vmax.f32 %v1602, %v1603
      %v1624 = vrot.slane %v1623, 4
      %v1625 = vmax.f32 %v1623, %v1624
      %v1626 = vrot.slane %v1625, 2
      %v1627 = vmax.f32 %v1625, %v1626
      %v1628 = vrot.slane %v1627, 1
      %v1629 = vmax.f32 %v1627, %v1628
      %v1630 = vmax.f32 %v1604, %v1605
      %v1631 = vrot.slane %v1630, 4
      %v1632 = vmax.f32 %v1630, %v1631
      %v1633 = vrot.slane %v1632, 2
      %v1634 = vmax.f32 %v1632, %v1633
      %v1635 = vrot.slane %v1634, 1
      %v1636 = vmax.f32 %v1634, %v1635
      %v1637 = vmax.f32 %v1606, %v1607
      %v1638 = vrot.slane %v1637, 4
      %v1639 = vmax.f32 %v1637, %v1638
      %v1640 = vrot.slane %v1639, 2
      %v1641 = vmax.f32 %v1639, %v1640
      %v1642 = vrot.slane %v1641, 1
      %v1643 = vmax.f32 %v1641, %v1642
      %v1644 = vmax.f32 %v1608, %v1609
      %v1645 = vrot.slane %v1644, 4
      %v1646 = vmax.f32 %v1644, %v1645
      %v1647 = vrot.slane %v1646, 2
      %v1648 = vmax.f32 %v1646, %v1647
      %v1649 = vrot.slane %v1648, 1
      %v1650 = vmax.f32 %v1648, %v1649
      %v1651 = vmax.f32 %v1610, %v1611
      %v1652 = vrot.slane %v1651, 4
      %v1653 = vmax.f32 %v1651, %v1652
      %v1654 = vrot.slane %v1653, 2
      %v1655 = vmax.f32 %v1653, %v1654
      %v1656 = vrot.slane %v1655, 1
      %v1657 = vmax.f32 %v1655, %v1656
      %v1658 = vmax.f32 %v1612, %v1613
      %v1659 = vrot.slane %v1658, 4
      %v1660 = vmax.f32 %v1658, %v1659
      %v1661 = vrot.slane %v1660, 2
      %v1662 = vmax.f32 %v1660, %v1661
      %v1663 = vrot.slane %v1662, 1
      %v1664 = vmax.f32 %v1662, %v1663
      %v1665 = vmax.f32 %v1614, %v1615
      %v1666 = vrot.slane %v1665, 4
      %v1667 = vmax.f32 %v1665, %v1666
      %v1668 = vrot.slane %v1667, 2
      %v1669 = vmax.f32 %v1667, %v1668
      %v1670 = vrot.slane %v1669, 1
      %v1671 = vmax.f32 %v1669, %v1670
      %v1672 = vmax.f32 %v1492, %v1622
      %v1673 = vmax.f32 %v1493, %v1629
      %v1674 = vmax.f32 %v1494, %v1636
      %v1675 = vmax.f32 %v1495, %v1643
      %v1676 = vmax.f32 %v1496, %v1650
      %v1677 = vmax.f32 %v1497, %v1657
      %v1678 = vmax.f32 %v1498, %v1664
      %v1679 = vmax.f32 %v1499, %v1671
      %v1680 = vld [vmem:[%s287 + $0x70] sm:$0xff]
      %v1681 = vld [vmem:[%s287 + $0x78] sm:$0xff]
      %v1682 = vld [vmem:[%s300 + $0x70] sm:$0xff]
      %v1683 = vld [vmem:[%s300 + $0x78] sm:$0xff]
      %vm1684 = vcmp.eq.s32.totalorder %v1682, 0
      %vm1685 = vcmp.eq.s32.totalorder %v1683, 0
      %vm1686 = vcmp.eq.s32.totalorder %v1682, 1
      %vm1687 = vcmp.eq.s32.totalorder %v1683, 1
      %vm1688 = vcmp.eq.s32.totalorder %v1682, 2
      %vm1689 = vcmp.eq.s32.totalorder %v1683, 2
      %vm1690 = vcmp.eq.s32.totalorder %v1682, 3
      %vm1691 = vcmp.eq.s32.totalorder %v1683, 3
      %vm1692 = vcmp.eq.s32.totalorder %v1682, 4
      %vm1693 = vcmp.eq.s32.totalorder %v1683, 4
      %vm1694 = vcmp.eq.s32.totalorder %v1682, 5
      %vm1695 = vcmp.eq.s32.totalorder %v1683, 5
      %vm1696 = vcmp.eq.s32.totalorder %v1682, 6
      %vm1697 = vcmp.eq.s32.totalorder %v1683, 6
      %vm1698 = vcmp.eq.s32.totalorder %v1682, 7
      %vm1699 = vcmp.eq.s32.totalorder %v1683, 7
      %v1700 = vsel %vm1684, 1, 0
      %v1701 = vsel %vm1685, 1, 0
      %v1702 = vsel %vm1686, 1, 0
      %v1703 = vsel %vm1687, 1, 0
      %v1704 = vsel %vm1688, 1, 0
      %v1705 = vsel %vm1689, 1, 0
      %v1706 = vsel %vm1690, 1, 0
      %v1707 = vsel %vm1691, 1, 0
      %v1708 = vsel %vm1692, 1, 0
      %v1709 = vsel %vm1693, 1, 0
      %v1710 = vsel %vm1694, 1, 0
      %v1711 = vsel %vm1695, 1, 0
      %v1712 = vsel %vm1696, 1, 0
      %v1713 = vsel %vm1697, 1, 0
      %v1714 = vsel %vm1698, 1, 0
      %v1715 = vsel %vm1699, 1, 0
      %1716 = vset.pattern.permute.xlu0 0
      %1717 = vperm.xlu0 %1716, %v1700
      %v1718 = vpop.permute.xlu0 %1717
      %1719 = vset.pattern.permute.xlu0 0
      %1720 = vperm.xlu0 %1719, %v1701
      %v1721 = vpop.permute.xlu0 %1720
      %1722 = vset.pattern.permute.xlu0 0
      %1723 = vperm.xlu0 %1722, %v1702
      %v1724 = vpop.permute.xlu0 %1723
      %1725 = vset.pattern.permute.xlu0 0
      %1726 = vperm.xlu0 %1725, %v1703
      %v1727 = vpop.permute.xlu0 %1726
      %1728 = vset.pattern.permute.xlu0 0
      %1729 = vperm.xlu0 %1728, %v1704
      %v1730 = vpop.permute.xlu0 %1729
      %1731 = vset.pattern.permute.xlu0 0
      %1732 = vperm.xlu0 %1731, %v1705
      %v1733 = vpop.permute.xlu0 %1732
      %1734 = vset.pattern.permute.xlu0 0
      %1735 = vperm.xlu0 %1734, %v1706
      %v1736 = vpop.permute.xlu0 %1735
      %1737 = vset.pattern.permute.xlu0 0
      %1738 = vperm.xlu0 %1737, %v1707
      %v1739 = vpop.permute.xlu0 %1738
      %1740 = vset.pattern.permute.xlu0 0
      %1741 = vperm.xlu0 %1740, %v1708
      %v1742 = vpop.permute.xlu0 %1741
      %1743 = vset.pattern.permute.xlu0 0
      %1744 = vperm.xlu0 %1743, %v1709
      %v1745 = vpop.permute.xlu0 %1744
      %1746 = vset.pattern.permute.xlu0 0
      %1747 = vperm.xlu0 %1746, %v1710
      %v1748 = vpop.permute.xlu0 %1747
      %1749 = vset.pattern.permute.xlu0 0
      %1750 = vperm.xlu0 %1749, %v1711
      %v1751 = vpop.permute.xlu0 %1750
      %1752 = vset.pattern.permute.xlu0 0
      %1753 = vperm.xlu0 %1752, %v1712
      %v1754 = vpop.permute.xlu0 %1753
      %1755 = vset.pattern.permute.xlu0 0
      %1756 = vperm.xlu0 %1755, %v1713
      %v1757 = vpop.permute.xlu0 %1756
      %1758 = vset.pattern.permute.xlu0 0
      %1759 = vperm.xlu0 %1758, %v1714
      %v1760 = vpop.permute.xlu0 %1759
      %1761 = vset.pattern.permute.xlu0 0
      %1762 = vperm.xlu0 %1761, %v1715
      %v1763 = vpop.permute.xlu0 %1762
      %vm1764 = vcmp.eq.s32.totalorder %v1718, 1
      %vm1765 = vcmp.eq.s32.totalorder %v1721, 1
      %vm1766 = vcmp.eq.s32.totalorder %v1724, 1
      %vm1767 = vcmp.eq.s32.totalorder %v1727, 1
      %vm1768 = vcmp.eq.s32.totalorder %v1730, 1
      %vm1769 = vcmp.eq.s32.totalorder %v1733, 1
      %vm1770 = vcmp.eq.s32.totalorder %v1736, 1
      %vm1771 = vcmp.eq.s32.totalorder %v1739, 1
      %vm1772 = vcmp.eq.s32.totalorder %v1742, 1
      %vm1773 = vcmp.eq.s32.totalorder %v1745, 1
      %vm1774 = vcmp.eq.s32.totalorder %v1748, 1
      %vm1775 = vcmp.eq.s32.totalorder %v1751, 1
      %vm1776 = vcmp.eq.s32.totalorder %v1754, 1
      %vm1777 = vcmp.eq.s32.totalorder %v1757, 1
      %vm1778 = vcmp.eq.s32.totalorder %v1760, 1
      %vm1779 = vcmp.eq.s32.totalorder %v1763, 1
      %v1780 = vsel %vm1764, %v1680, -inf
      %v1781 = vsel %vm1765, %v1681, -inf
      %v1782 = vsel %vm1766, %v1680, -inf
      %v1783 = vsel %vm1767, %v1681, -inf
      %v1784 = vsel %vm1768, %v1680, -inf
      %v1785 = vsel %vm1769, %v1681, -inf
      %v1786 = vsel %vm1770, %v1680, -inf
      %v1787 = vsel %vm1771, %v1681, -inf
      %v1788 = vsel %vm1772, %v1680, -inf
      %v1789 = vsel %vm1773, %v1681, -inf
      %v1790 = vsel %vm1774, %v1680, -inf
      %v1791 = vsel %vm1775, %v1681, -inf
      %v1792 = vsel %vm1776, %v1680, -inf
      %v1793 = vsel %vm1777, %v1681, -inf
      %v1794 = vsel %vm1778, %v1680, -inf
      %v1795 = vsel %vm1779, %v1681, -inf
      %v1796 = vmax.f32 %v1780, %v1781
      %v1797 = vrot.slane %v1796, 4
      %v1798 = vmax.f32 %v1796, %v1797
      %v1799 = vrot.slane %v1798, 2
      %v1800 = vmax.f32 %v1798, %v1799
      %v1801 = vrot.slane %v1800, 1
      %v1802 = vmax.f32 %v1800, %v1801
      %v1803 = vmax.f32 %v1782, %v1783
      %v1804 = vrot.slane %v1803, 4
      %v1805 = vmax.f32 %v1803, %v1804
      %v1806 = vrot.slane %v1805, 2
      %v1807 = vmax.f32 %v1805, %v1806
      %v1808 = vrot.slane %v1807, 1
      %v1809 = vmax.f32 %v1807, %v1808
      %v1810 = vmax.f32 %v1784, %v1785
      %v1811 = vrot.slane %v1810, 4
      %v1812 = vmax.f32 %v1810, %v1811
      %v1813 = vrot.slane %v1812, 2
      %v1814 = vmax.f32 %v1812, %v1813
      %v1815 = vrot.slane %v1814, 1
      %v1816 = vmax.f32 %v1814, %v1815
      %v1817 = vmax.f32 %v1786, %v1787
      %v1818 = vrot.slane %v1817, 4
      %v1819 = vmax.f32 %v1817, %v1818
      %v1820 = vrot.slane %v1819, 2
      %v1821 = vmax.f32 %v1819, %v1820
      %v1822 = vrot.slane %v1821, 1
      %v1823 = vmax.f32 %v1821, %v1822
      %v1824 = vmax.f32 %v1788, %v1789
      %v1825 = vrot.slane %v1824, 4
      %v1826 = vmax.f32 %v1824, %v1825
      %v1827 = vrot.slane %v1826, 2
      %v1828 = vmax.f32 %v1826, %v1827
      %v1829 = vrot.slane %v1828, 1
      %v1830 = vmax.f32 %v1828, %v1829
      %v1831 = vmax.f32 %v1790, %v1791
      %v1832 = vrot.slane %v1831, 4
      %v1833 = vmax.f32 %v1831, %v1832
      %v1834 = vrot.slane %v1833, 2
      %v1835 = vmax.f32 %v1833, %v1834
      %v1836 = vrot.slane %v1835, 1
      %v1837 = vmax.f32 %v1835, %v1836
      %v1838 = vmax.f32 %v1792, %v1793
      %v1839 = vrot.slane %v1838, 4
      %v1840 = vmax.f32 %v1838, %v1839
      %v1841 = vrot.slane %v1840, 2
      %v1842 = vmax.f32 %v1840, %v1841
      %v1843 = vrot.slane %v1842, 1
      %v1844 = vmax.f32 %v1842, %v1843
      %v1845 = vmax.f32 %v1794, %v1795
      %v1846 = vrot.slane %v1845, 4
      %v1847 = vmax.f32 %v1845, %v1846
      %v1848 = vrot.slane %v1847, 2
      %v1849 = vmax.f32 %v1847, %v1848
      %v1850 = vrot.slane %v1849, 1
      %v1851 = vmax.f32 %v1849, %v1850
      %v1852 = vmax.f32 %v1672, %v1802
      %v1853 = vmax.f32 %v1673, %v1809
      %v1854 = vmax.f32 %v1674, %v1816
      %v1855 = vmax.f32 %v1675, %v1823
      %v1856 = vmax.f32 %v1676, %v1830
      %v1857 = vmax.f32 %v1677, %v1837
      %v1858 = vmax.f32 %v1678, %v1844
      %v1859 = vmax.f32 %v1679, %v1851
      %v1860 = vld [vmem:[%s314] sm:$0xff]
      %vm1869 = vcmask 1041409
      %v1870 = vsel %vm1869, %v1853, %v1852
      %vm1871 = vcmask 1042434
      %v1872 = vsel %vm1871, %v1854, %v1870
      %vm1873 = vcmask 1043459
      %v1874 = vsel %vm1873, %v1855, %v1872
      %vm1875 = vcmask 1044484
      %v1876 = vsel %vm1875, %v1856, %v1874
      %vm1877 = vcmask 1045509
      %v1878 = vsel %vm1877, %v1857, %v1876
      %vm1879 = vcmask 1046534
      %v1880 = vsel %vm1879, %v1858, %v1878
      %vm1881 = vcmask 1047559
      %v1882 = vsel %vm1881, %v1859, %v1880
      %v1884 = vmax.f32 %v1860, %v1882
      %1885 = vst [vmem:[%s314] sm:$0xff] %v1884
      %p1886 = scmp.lt.s32.totalorder %s21, 1
      %s1887 = scalar_select %p1886, %s21, 1
      %s1888 = smul.addr %s1887, 8
      %s1889 = scalar_lea.vmem %s3, %s1888
      %p1890 = scmp.lt.s32.totalorder %s21, 1
      %s1891 = scalar_select %p1890, %s21, 1
      %s1892 = smul.addr %s1891, 8
      %s1893 = scalar_lea.vmem %s4, %s1892
      %p1894 = scmp.lt.s32.totalorder %s21, 1
      %s1895 = scalar_select %p1894, %s21, 1
      %s1896 = smul.addr %s1895, 8
      %s1897 = scalar_lea.vmem %s5, %s1896
      // Predicated region
      $region37: #{_level_pool_padded.1} parent=31 // pred_check
        %p1898 = pneg %p131
      $region38: #{_level_pool_padded.1} parent=31 // pred_check_branch
        %1900 = sbr.rel (%p1898) target = $region40
      $region39: #{_level_pool_padded.1} parent=31 // pred_region
        _
      $region40: #{_level_pool_padded.1} parent=31 // pred_fallthru
        _
      // Predicated region
      $region41: #{_level_pool_padded.1} parent=31 // pred_check
        %p1901 = pneg %p157
      $region42: #{_level_pool_padded.1} parent=31 // pred_check_branch
        %1903 = sbr.rel (%p1901) target = $region44
      $region43: #{_level_pool_padded.1} parent=31 // pred_region
        _
      $region44: #{_level_pool_padded.1} parent=31 // pred_fallthru
        _
      // Predicated region
      $region45: #{_level_pool_padded.1} parent=31 // pred_check
        %p1904 = pneg %p183
      $region46: #{_level_pool_padded.1} parent=31 // pred_check_branch
        %1906 = sbr.rel (%p1904) target = $region48
      $region47: #{_level_pool_padded.1} parent=31 // pred_region
        _
      $region48: #{_level_pool_padded.1} parent=31 // pred_fallthru
        _
    $region32: #{_level_pool_padded.1} parent=5 // pred_fallthru
      _
    %p1907 = scmp.le.s32.totalorder 2, %s12
    // Predicated region
    $region49: #{_level_pool_padded.1} parent=5 // pred_check
      %p1908 = pneg %p1907
    $region50: #{_level_pool_padded.1} parent=5 // pred_check_branch
      %1910 = sbr.rel (%p1908) target = $region52
    $region51: #{_level_pool_padded.1} parent=5 // pred_region
      %s1911 = ssub.s32 %s12, 2
      // Predicated region
      $region53: #{_level_pool_padded.1} parent=51 // pred_check
        %p1912 = pneg %p137
      $region54: #{_level_pool_padded.1} parent=51 // pred_check_branch
        %1914 = sbr.rel (%p1912) target = $region56
      $region55: #{_level_pool_padded.1} parent=51 // pred_region
        %p1915 = scmp.lt.s32.totalorder %s23, 1
        %s1916 = scalar_select %p1915, %s23, 1
        %s1917 = smul.addr %s1916, 8
        %s1918 = scalar_lea.vmem %s3, %s1917
      $region56: #{_level_pool_padded.1} parent=51 // pred_fallthru
        _
      // Predicated region
      $region57: #{_level_pool_padded.1} parent=51 // pred_check
        %p1919 = pneg %p163
      $region58: #{_level_pool_padded.1} parent=51 // pred_check_branch
        %1921 = sbr.rel (%p1919) target = $region60
      $region59: #{_level_pool_padded.1} parent=51 // pred_region
        %p1922 = scmp.lt.s32.totalorder %s23, 1
        %s1923 = scalar_select %p1922, %s23, 1
        %s1924 = smul.addr %s1923, 8
        %s1925 = scalar_lea.vmem %s4, %s1924
      $region60: #{_level_pool_padded.1} parent=51 // pred_fallthru
        _
      // Predicated region
      $region61: #{_level_pool_padded.1} parent=51 // pred_check
        %p1926 = pneg %p189
      $region62: #{_level_pool_padded.1} parent=51 // pred_check_branch
        %1928 = sbr.rel (%p1926) target = $region64
      $region63: #{_level_pool_padded.1} parent=51 // pred_region
        %p1929 = scmp.lt.s32.totalorder %s23, 1
        %s1930 = scalar_select %p1929, %s23, 1
        %s1931 = smul.addr %s1930, 8
        %s1932 = scalar_lea.vmem %s5, %s1931
      $region64: #{_level_pool_padded.1} parent=51 // pred_fallthru
        _
    $region52: #{_level_pool_padded.1} parent=5 // pred_fallthru
      _
  $region6: #{_level_pool_padded.1} parent=0 // loop_footer
    %s16 = sadd.s32 1, %s12
  $region7: #{_level_pool_padded.1} parent=0 // loop_footer_branch
    %11 = sbr.rel target = $region3
  $region8: #{_level_pool_padded.1} parent=0 // loop_exit
    _

</llo_original>
